<compile_context>
chip_gen: v6e
topology: v6e:2x2x1
jax: 0.10.0
libtpu: 0.0.40
codegen_flags: <defaults>
</compile_context>

<pallas_src>
import jax
import jax.numpy as jnp
import numpy as np
from jax.experimental import pallas as pl
from jax.experimental.pallas import tpu as pltpu

# small, forward-consistent dims
F_DIM = 32                    # feature_dim
H_DIM = 32                    # hidden_dim (position embedding)
E_DIM = F_DIM + H_DIM         # attention embed dim = 64
N_HEADS = 4
HEAD_DIM = E_DIM // N_HEADS   # 16
LN_EPS = 1e-5
NUM_POS = 1000

# packing trick used for the small-vector operands: 2*F == E for these dims,
# so bf1 fits in the same [*, E] stack as bo/g1/b1.
assert 2 * F_DIM == E_DIM


def _layer_norm(x, gamma, beta):
    mu = jnp.mean(x, axis=-1, keepdims=True)
    var = jnp.mean((x - mu) ** 2, axis=-1, keepdims=True)
    return (x - mu) * jax.lax.rsqrt(var + LN_EPS) * gamma + beta


def inter_line_kernel(x_ref,            # VMEM [S, F]     (one batch element)
                      pos_ref,          # VMEM [S, H]     (gathered pos emb)
                      wqkv_ref,         # VMEM [E, 3E]    fused QKV weight
                      bqkv_ref,         # VMEM [1, 3E]    fused QKV bias
                      wo_ref,           # VMEM [E, E]
                      wf1_ref,          # VMEM [E, 2F]
                      wf2_ref,          # VMEM [2F, F]
                      vecE_ref,         # VMEM [4, E]     rows: bo, g1, b1, bf1
                      vecF_ref,         # VMEM [3, F]     rows: bf2, g2, b2
                      out_ref):         # VMEM [S, F]
    S = x_ref.shape[0]
    NH, HD, E = N_HEADS, HEAD_DIM, E_DIM

    x = x_ref[...]                                            # [S, F]
    enh = jnp.concatenate([x, pos_ref[...]], axis=-1)         # [S, E]

    # --- fused QKV projection: one lane-dense matmul, N = 3E = 192 ---
    qkv = jnp.dot(enh, wqkv_ref[...],
                  preferred_element_type=jnp.float32) + bqkv_ref[...]   # [S, 3E]

    def split_heads(t):                                        # [S, E] -> [NH, S, HD]
        return t.reshape(S, NH, HD).transpose(1, 0, 2)

    q = split_heads(qkv[:, :E])
    k = split_heads(qkv[:, E:2 * E])
    v = split_heads(qkv[:, 2 * E:])

    # --- per-head attention (head is the batch axis of the einsums) ---
    scale = 1.0 / (HD ** 0.5)
    scores = jnp.einsum('hqd,hkd->hqk', q * scale, k,
                        preferred_element_type=jnp.float32)    # [NH, S, S]
    scores = scores - jnp.max(scores, axis=-1, keepdims=True)
    p = jnp.exp(scores)
    p = p * pl.reciprocal(jnp.sum(p, axis=-1, keepdims=True), approx=True)
    o = jnp.einsum('hqk,hkd->hqd', p, v,
                   preferred_element_type=jnp.float32)         # [NH, S, HD]

    # concat heads -> single output-projection matmul
    o = o.transpose(1, 0, 2).reshape(S, E)                     # [S, E]
    attn = jnp.dot(o, wo_ref[...], preferred_element_type=jnp.float32)

    vE = vecE_ref[...]
    vF = vecF_ref[...]
    bo, g1, b1, bf1 = vE[0:1], vE[1:2], vE[2:3], vE[3:4]
    bf2, g2, b2 = vF[0:1], vF[1:2], vF[2:3]

    # --- residual + LayerNorm1 ---
    y1 = _layer_norm(enh + attn + bo, g1, b1)                  # [S, E]

    # --- feed-forward (dropout is identity in eval mode) ---
    hdn = jnp.dot(y1, wf1_ref[...], preferred_element_type=jnp.float32) + bf1
    hdn = jnp.maximum(hdn, 0.0)
    ff = jnp.dot(hdn, wf2_ref[...], preferred_element_type=jnp.float32) + bf2

    # --- residual against original line_features + LayerNorm2 ---
    out_ref[...] = _layer_norm(x + ff, g2, b2).astype(out_ref.dtype)


def inter_line_relationship(line_features, line_positions, params):
    B, S, F = line_features.shape
    assert F == F_DIM
    E = E_DIM

    # embedding gather in the wrapper: ~B*S*H floats of DMA instead of the
    # whole table; jnp.take also gives defined out-of-range behavior.
    pos_emb = jnp.take(params["pos_embedding"],
                       line_positions.astype(jnp.int32), axis=0)   # [B, S, H]

    # trace-time weight plumbing (zero kernel cost, O(1) in B):
    wqkv = jnp.concatenate([params["wq"], params["wk"], params["wv"]], axis=1)  # [E, 3E]
    bqkv = jnp.concatenate([params["bq"], params["bk"], params["bv"]])[None, :]  # [1, 3E]
    vecE = jnp.stack([params["bo"], params["g1"], params["b1"], params["bf1"]])  # [4, E]
    vecF = jnp.stack([params["bf2"], params["g2"], params["b2"]])                # [3, F]

    grid_spec = pltpu.PrefetchScalarGridSpec(
        num_scalar_prefetch=0,
        grid=(B,),                                             # one batch per step
        in_specs=[
            pl.BlockSpec((None, S, F_DIM), lambda b: (b, 0, 0)),     # x
            pl.BlockSpec((None, S, H_DIM), lambda b: (b, 0, 0)),     # pos_emb
            pl.BlockSpec((E, 3 * E), lambda b: (0, 0)),              # wqkv (resident)
            pl.BlockSpec((1, 3 * E), lambda b: (0, 0)),              # bqkv
            pl.BlockSpec((E, E), lambda b: (0, 0)),                  # wo
            pl.BlockSpec((E, 2 * F_DIM), lambda b: (0, 0)),          # wf1
            pl.BlockSpec((2 * F_DIM, F_DIM), lambda b: (0, 0)),      # wf2
            pl.BlockSpec((4, E), lambda b: (0, 0)),                  # vecE
            pl.BlockSpec((3, F_DIM), lambda b: (0, 0)),              # vecF
        ],
        out_specs=pl.BlockSpec((None, S, F_DIM), lambda b: (b, 0, 0)),
    )

    out = pl.pallas_call(
        inter_line_kernel,
        out_shape=jax.ShapeDtypeStruct((B, S, F_DIM), line_features.dtype),
        grid_spec=grid_spec,
        compiler_params=pltpu.CompilerParams(
            dimension_semantics=("parallel",)),                # megacore-shardable
    )(line_features, pos_emb, wqkv, bqkv,
      params["wo"], params["wf1"], params["wf2"], vecE, vecF)
    return out


def init_params(key):
    ks = jax.random.split(key, 13)

    def rn(k, shape, scale=0.05):
        return (scale * jax.random.normal(k, shape)).astype(jnp.float32)

    return dict(
        pos_embedding=rn(ks[0], (NUM_POS, H_DIM), 1.0),
        # attention projections stored (in, out) so math is x @ W + b
        wq=rn(ks[1], (E_DIM, E_DIM)), bq=rn(ks[2], (E_DIM,)),
        wk=rn(ks[3], (E_DIM, E_DIM)), bk=rn(ks[4], (E_DIM,)),
        wv=rn(ks[5], (E_DIM, E_DIM)), bv=rn(ks[6], (E_DIM,)),
        wo=rn(ks[7], (E_DIM, E_DIM)), bo=rn(ks[8], (E_DIM,)),
        g1=jnp.ones((E_DIM,), jnp.float32), b1=jnp.zeros((E_DIM,), jnp.float32),
        wf1=rn(ks[9], (E_DIM, 2 * F_DIM)), bf1=rn(ks[10], (2 * F_DIM,)),
        wf2=rn(ks[11], (2 * F_DIM, F_DIM)), bf2=rn(ks[12], (F_DIM,)),
        g2=jnp.ones((F_DIM,), jnp.float32), b2=jnp.zeros((F_DIM,), jnp.float32),
    )


def reference(line_features, line_positions, p):
    """Pure-JAX reference matching PyTorch eval-mode forward."""
    B, S, _ = line_features.shape
    pos_emb = jnp.take(p["pos_embedding"], line_positions, axis=0)
    enh = jnp.concatenate([line_features, pos_emb], axis=-1)
    q = enh @ p["wq"] + p["bq"]
    k = enh @ p["wk"] + p["bk"]
    v = enh @ p["wv"] + p["bv"]

    def split(t):
        return t.reshape(B, S, N_HEADS, HEAD_DIM).transpose(0, 2, 1, 3)

    q, k, v = split(q), split(k), split(v)
    s = jnp.einsum('bhqd,bhkd->bhqk', q, k) / (HEAD_DIM ** 0.5)
    a = jax.nn.softmax(s, axis=-1)
    o = jnp.einsum('bhqk,bhkd->bhqd', a, v).transpose(0, 2, 1, 3).reshape(B, S, E_DIM)
    o = o @ p["wo"] + p["bo"]
    y1 = _layer_norm(enh + o, p["g1"], p["b1"])
    h = jax.nn.relu(y1 @ p["wf1"] + p["bf1"])
    ff = h @ p["wf2"] + p["bf2"]
    return _layer_norm(line_features + ff, p["g2"], p["b2"])


if __name__ == "__main__":
    key = jax.random.PRNGKey(0)
    k_par, k_x, k_pos = jax.random.split(key, 3)

    B, S = 2, 8
    params = init_params(k_par)
    line_features = jax.random.normal(k_x, (B, S, F_DIM), dtype=jnp.float32)
    line_positions = jax.random.randint(k_pos, (B, S), 0, NUM_POS, dtype=jnp.int32)

    out = jax.block_until_ready(inter_line_relationship(line_features, line_positions, params))
    ref = jax.block_until_ready(reference(line_features, line_positions, params))

    # tolerance relaxed slightly vs 1e-4 because of pl.reciprocal(approx=True)
    np.testing.assert_allclose(np.asarray(out), np.asarray(ref), atol=2e-3, rtol=2e-3)

    print("KERNEL_OK")
</pallas_src>

<mosaic_0001>
module attributes {stable_mosaic.version = 11 : i64} {
  func.func @inter_line_kernel(%arg0: i32, %arg1: memref<1x8x32xf32, #tpu.memory_space<vmem>>, %arg2: memref<1x8x32xf32, #tpu.memory_space<vmem>>, %arg3: memref<64x192xf32, #tpu.memory_space<vmem>>, %arg4: memref<1x192xf32, #tpu.memory_space<vmem>>, %arg5: memref<64x64xf32, #tpu.memory_space<vmem>>, %arg6: memref<64x64xf32, #tpu.memory_space<vmem>>, %arg7: memref<64x32xf32, #tpu.memory_space<vmem>>, %arg8: memref<4x64xf32, #tpu.memory_space<vmem>>, %arg9: memref<3x32xf32, #tpu.memory_space<vmem>>, %arg10: memref<1x8x32xf32, #tpu.memory_space<vmem>>) attributes {dimension_semantics = [#tpu.dimension_semantics<parallel>], iteration_bounds = array<i64: 2>, scalar_prefetch = 0 : i64, scratch_operands = 0 : i64, tpu.core_type = #tpu.core_type<tc>, window_params = [{transform_indices = @transform_0, window_bounds = array<i64: 1, 8, 32>}, {transform_indices = @transform_1, window_bounds = array<i64: 1, 8, 32>}, {pipeline_mode = #tpu.pipeline_mode<synchronous>, transform_indices = @transform_2, window_bounds = array<i64: 64, 192>}, {pipeline_mode = #tpu.pipeline_mode<synchronous>, transform_indices = @transform_3, window_bounds = array<i64: 1, 192>}, {pipeline_mode = #tpu.pipeline_mode<synchronous>, transform_indices = @transform_4, window_bounds = array<i64: 64, 64>}, {pipeline_mode = #tpu.pipeline_mode<synchronous>, transform_indices = @transform_5, window_bounds = array<i64: 64, 64>}, {pipeline_mode = #tpu.pipeline_mode<synchronous>, transform_indices = @transform_6, window_bounds = array<i64: 64, 32>}, {pipeline_mode = #tpu.pipeline_mode<synchronous>, transform_indices = @transform_7, window_bounds = array<i64: 4, 64>}, {pipeline_mode = #tpu.pipeline_mode<synchronous>, transform_indices = @transform_8, window_bounds = array<i64: 3, 32>}, {transform_indices = @transform_9, window_bounds = array<i64: 1, 8, 32>}]} {
    %c0 = arith.constant 0 : index
    %c0_0 = arith.constant 0 : index
    %c0_1 = arith.constant 0 : index
    %0 = vector.load %arg1[%c0, %c0_0, %c0_1] : memref<1x8x32xf32, #tpu.memory_space<vmem>>, vector<1x8x32xf32>
    %1 = vector.shape_cast %0 : vector<1x8x32xf32> to vector<8x32xf32>
    %c0_2 = arith.constant 0 : index
    %c0_3 = arith.constant 0 : index
    %c0_4 = arith.constant 0 : index
    %2 = vector.load %arg2[%c0_2, %c0_3, %c0_4] : memref<1x8x32xf32, #tpu.memory_space<vmem>>, vector<1x8x32xf32>
    %3 = vector.shape_cast %2 : vector<1x8x32xf32> to vector<8x32xf32>
    %4 = tpu.concatenate %1, %3 in 1 : vector<8x32xf32>, vector<8x32xf32> -> vector<8x64xf32>
    %c0_5 = arith.constant 0 : index
    %c0_6 = arith.constant 0 : index
    %5 = vector.load %arg3[%c0_5, %c0_6] : memref<64x192xf32, #tpu.memory_space<vmem>>, vector<64x192xf32>
    %cst = arith.constant dense<0.000000e+00> : vector<8x192xf32>
    %6 = tpu.matmul %4, %5, %cst {dimension_numbers = #tpu.dot_dimension_numbers<[1], [0], [0], [1], [0, 0, 1, 1], [], []>} : vector<8x64xf32>, vector<64x192xf32>, vector<8x192xf32> -> vector<8x192xf32>
    %c0_7 = arith.constant 0 : index
    %c0_8 = arith.constant 0 : index
    %7 = vector.load %arg4[%c0_7, %c0_8] : memref<1x192xf32, #tpu.memory_space<vmem>>, vector<1x192xf32>
    %8 = vector.broadcast %7 : vector<1x192xf32> to vector<8x192xf32>
    %9 = arith.addf %6, %8 : vector<8x192xf32>
    %10 = vector.extract_strided_slice %9 {offsets = [0, 0], sizes = [8, 64], strides = [1, 1]} : vector<8x192xf32> to vector<8x64xf32>
    %11 = vector.shape_cast %10 : vector<8x64xf32> to vector<8x4x16xf32>
    %12 = tpu.transpose %11, [1, 0, 2] : vector<8x4x16xf32> -> vector<4x8x16xf32>
    %13 = vector.extract_strided_slice %9 {offsets = [0, 64], sizes = [8, 64], strides = [1, 1]} : vector<8x192xf32> to vector<8x64xf32>
    %14 = vector.shape_cast %13 : vector<8x64xf32> to vector<8x4x16xf32>
    %15 = tpu.transpose %14, [1, 0, 2] : vector<8x4x16xf32> -> vector<4x8x16xf32>
    %16 = vector.extract_strided_slice %9 {offsets = [0, 128], sizes = [8, 64], strides = [1, 1]} : vector<8x192xf32> to vector<8x64xf32>
    %17 = vector.shape_cast %16 : vector<8x64xf32> to vector<8x4x16xf32>
    %18 = tpu.transpose %17, [1, 0, 2] : vector<8x4x16xf32> -> vector<4x8x16xf32>
    %cst_9 = arith.constant 2.500000e-01 : f32
    %19 = vector.broadcast %cst_9 : f32 to vector<4x8x16xf32>
    %20 = arith.mulf %12, %19 : vector<4x8x16xf32>
    "tpu.trace_start"() <{level = 10 : i32, message = "hqd,hkd->hqk"}> : () -> ()
    %cst_10 = arith.constant dense<0.000000e+00> : vector<4x8x8xf32>
    %21 = tpu.matmul %20, %15, %cst_10 {dimension_numbers = #tpu.dot_dimension_numbers<[2], [2], [1], [1], [0, 0, 0, 1, 1, 1], [0], [0]>} : vector<4x8x16xf32>, vector<4x8x16xf32>, vector<4x8x8xf32> -> vector<4x8x8xf32>
    "tpu.trace_stop"() : () -> ()
    %cst_11 = arith.constant dense<0xFF800000> : vector<4x8xf32>
    %22 = vector.multi_reduction <maximumf>, %21, %cst_11 [2] : vector<4x8x8xf32> to vector<4x8xf32>
    %23 = vector.shape_cast %22 : vector<4x8xf32> to vector<4x8x1xf32>
    %24 = vector.broadcast %23 : vector<4x8x1xf32> to vector<4x8x8xf32>
    %25 = arith.subf %21, %24 : vector<4x8x8xf32>
    %26 = math.exp %25 : vector<4x8x8xf32>
    %cst_12 = arith.constant dense<0.000000e+00> : vector<4x8xf32>
    %27 = vector.multi_reduction <add>, %26, %cst_12 [2] : vector<4x8x8xf32> to vector<4x8xf32>
    %28 = vector.shape_cast %27 : vector<4x8xf32> to vector<4x8x1xf32>
    %29 = tpu.reciprocal %28 {approx = true} : vector<4x8x1xf32> -> vector<4x8x1xf32>
    %30 = vector.broadcast %29 : vector<4x8x1xf32> to vector<4x8x8xf32>
    %31 = arith.mulf %26, %30 : vector<4x8x8xf32>
    "tpu.trace_start"() <{level = 10 : i32, message = "hqk,hkd->hqd"}> : () -> ()
    %cst_13 = arith.constant dense<0.000000e+00> : vector<4x8x16xf32>
    %32 = tpu.matmul %31, %18, %cst_13 {dimension_numbers = #tpu.dot_dimension_numbers<[2], [1], [1], [2], [0, 0, 0, 1, 1, 2], [0], [0]>} : vector<4x8x8xf32>, vector<4x8x16xf32>, vector<4x8x16xf32> -> vector<4x8x16xf32>
    "tpu.trace_stop"() : () -> ()
    %33 = tpu.transpose %32, [1, 0, 2] : vector<4x8x16xf32> -> vector<8x4x16xf32>
    %34 = vector.shape_cast %33 : vector<8x4x16xf32> to vector<8x64xf32>
    %c0_14 = arith.constant 0 : index
    %c0_15 = arith.constant 0 : index
    %35 = vector.load %arg5[%c0_14, %c0_15] : memref<64x64xf32, #tpu.memory_space<vmem>>, vector<64x64xf32>
    %cst_16 = arith.constant dense<0.000000e+00> : vector<8x64xf32>
    %36 = tpu.matmul %34, %35, %cst_16 {dimension_numbers = #tpu.dot_dimension_numbers<[1], [0], [0], [1], [0, 0, 1, 1], [], []>} : vector<8x64xf32>, vector<64x64xf32>, vector<8x64xf32> -> vector<8x64xf32>
    %c0_17 = arith.constant 0 : index
    %c0_18 = arith.constant 0 : index
    %37 = vector.load %arg8[%c0_17, %c0_18] : memref<4x64xf32, #tpu.memory_space<vmem>>, vector<4x64xf32>
    %c0_19 = arith.constant 0 : index
    %c0_20 = arith.constant 0 : index
    %38 = vector.load %arg9[%c0_19, %c0_20] : memref<3x32xf32, #tpu.memory_space<vmem>>, vector<3x32xf32>
    %39 = vector.extract_strided_slice %37 {offsets = [0, 0], sizes = [1, 64], strides = [1, 1]} : vector<4x64xf32> to vector<1x64xf32>
    %40 = vector.extract_strided_slice %37 {offsets = [1, 0], sizes = [1, 64], strides = [1, 1]} : vector<4x64xf32> to vector<1x64xf32>
    %41 = vector.extract_strided_slice %37 {offsets = [2, 0], sizes = [1, 64], strides = [1, 1]} : vector<4x64xf32> to vector<1x64xf32>
    %42 = vector.extract_strided_slice %37 {offsets = [3, 0], sizes = [1, 64], strides = [1, 1]} : vector<4x64xf32> to vector<1x64xf32>
    %43 = vector.extract_strided_slice %38 {offsets = [0, 0], sizes = [1, 32], strides = [1, 1]} : vector<3x32xf32> to vector<1x32xf32>
    %44 = vector.extract_strided_slice %38 {offsets = [1, 0], sizes = [1, 32], strides = [1, 1]} : vector<3x32xf32> to vector<1x32xf32>
    %45 = vector.extract_strided_slice %38 {offsets = [2, 0], sizes = [1, 32], strides = [1, 1]} : vector<3x32xf32> to vector<1x32xf32>
    %46 = arith.addf %4, %36 : vector<8x64xf32>
    %47 = vector.broadcast %39 : vector<1x64xf32> to vector<8x64xf32>
    %48 = arith.addf %46, %47 : vector<8x64xf32>
    %cst_21 = arith.constant dense<0.000000e+00> : vector<8xf32>
    %49 = vector.multi_reduction <add>, %48, %cst_21 [1] : vector<8x64xf32> to vector<8xf32>
    %50 = vector.shape_cast %49 : vector<8xf32> to vector<8x1xf32>
    %cst_22 = arith.constant 6.400000e+01 : f32
    %51 = vector.broadcast %cst_22 : f32 to vector<8x1xf32>
    %52 = arith.divf %50, %51 : vector<8x1xf32>
    %53 = vector.broadcast %52 : vector<8x1xf32> to vector<8x64xf32>
    %54 = arith.subf %48, %53 : vector<8x64xf32>
    %55 = arith.mulf %54, %54 : vector<8x64xf32>
    %cst_23 = arith.constant dense<0.000000e+00> : vector<8xf32>
    %56 = vector.multi_reduction <add>, %55, %cst_23 [1] : vector<8x64xf32> to vector<8xf32>
    %57 = vector.shape_cast %56 : vector<8xf32> to vector<8x1xf32>
    %cst_24 = arith.constant 6.400000e+01 : f32
    %58 = vector.broadcast %cst_24 : f32 to vector<8x1xf32>
    %59 = arith.divf %57, %58 : vector<8x1xf32>
    %60 = vector.broadcast %52 : vector<8x1xf32> to vector<8x64xf32>
    %61 = arith.subf %48, %60 : vector<8x64xf32>
    %cst_25 = arith.constant 9.99999974E-6 : f32
    %62 = vector.broadcast %cst_25 : f32 to vector<8x1xf32>
    %63 = arith.addf %59, %62 : vector<8x1xf32>
    %64 = math.rsqrt %63 : vector<8x1xf32>
    %65 = vector.broadcast %64 : vector<8x1xf32> to vector<8x64xf32>
    %66 = arith.mulf %61, %65 : vector<8x64xf32>
    %67 = vector.broadcast %40 : vector<1x64xf32> to vector<8x64xf32>
    %68 = arith.mulf %66, %67 : vector<8x64xf32>
    %69 = vector.broadcast %41 : vector<1x64xf32> to vector<8x64xf32>
    %70 = arith.addf %68, %69 : vector<8x64xf32>
    %c0_26 = arith.constant 0 : index
    %c0_27 = arith.constant 0 : index
    %71 = vector.load %arg6[%c0_26, %c0_27] : memref<64x64xf32, #tpu.memory_space<vmem>>, vector<64x64xf32>
    %cst_28 = arith.constant dense<0.000000e+00> : vector<8x64xf32>
    %72 = tpu.matmul %70, %71, %cst_28 {dimension_numbers = #tpu.dot_dimension_numbers<[1], [0], [0], [1], [0, 0, 1, 1], [], []>} : vector<8x64xf32>, vector<64x64xf32>, vector<8x64xf32> -> vector<8x64xf32>
    %73 = vector.broadcast %42 : vector<1x64xf32> to vector<8x64xf32>
    %74 = arith.addf %72, %73 : vector<8x64xf32>
    %cst_29 = arith.constant 0.000000e+00 : f32
    %75 = vector.broadcast %cst_29 : f32 to vector<8x64xf32>
    %76 = arith.maximumf %74, %75 : vector<8x64xf32>
    %c0_30 = arith.constant 0 : index
    %c0_31 = arith.constant 0 : index
    %77 = vector.load %arg7[%c0_30, %c0_31] : memref<64x32xf32, #tpu.memory_space<vmem>>, vector<64x32xf32>
    %cst_32 = arith.constant dense<0.000000e+00> : vector<8x32xf32>
    %78 = tpu.matmul %76, %77, %cst_32 {dimension_numbers = #tpu.dot_dimension_numbers<[1], [0], [0], [1], [0, 0, 1, 1], [], []>} : vector<8x64xf32>, vector<64x32xf32>, vector<8x32xf32> -> vector<8x32xf32>
    %79 = vector.broadcast %43 : vector<1x32xf32> to vector<8x32xf32>
    %80 = arith.addf %78, %79 : vector<8x32xf32>
    %81 = arith.addf %1, %80 : vector<8x32xf32>
    %cst_33 = arith.constant dense<0.000000e+00> : vector<8xf32>
    %82 = vector.multi_reduction <add>, %81, %cst_33 [1] : vector<8x32xf32> to vector<8xf32>
    %83 = vector.shape_cast %82 : vector<8xf32> to vector<8x1xf32>
    %cst_34 = arith.constant 3.200000e+01 : f32
    %84 = vector.broadcast %cst_34 : f32 to vector<8x1xf32>
    %85 = arith.divf %83, %84 : vector<8x1xf32>
    %86 = vector.broadcast %85 : vector<8x1xf32> to vector<8x32xf32>
    %87 = arith.subf %81, %86 : vector<8x32xf32>
    %88 = arith.mulf %87, %87 : vector<8x32xf32>
    %cst_35 = arith.constant dense<0.000000e+00> : vector<8xf32>
    %89 = vector.multi_reduction <add>, %88, %cst_35 [1] : vector<8x32xf32> to vector<8xf32>
    %90 = vector.shape_cast %89 : vector<8xf32> to vector<8x1xf32>
    %cst_36 = arith.constant 3.200000e+01 : f32
    %91 = vector.broadcast %cst_36 : f32 to vector<8x1xf32>
    %92 = arith.divf %90, %91 : vector<8x1xf32>
    %93 = vector.broadcast %85 : vector<8x1xf32> to vector<8x32xf32>
    %94 = arith.subf %81, %93 : vector<8x32xf32>
    %cst_37 = arith.constant 9.99999974E-6 : f32
    %95 = vector.broadcast %cst_37 : f32 to vector<8x1xf32>
    %96 = arith.addf %92, %95 : vector<8x1xf32>
    %97 = math.rsqrt %96 : vector<8x1xf32>
    %98 = vector.broadcast %97 : vector<8x1xf32> to vector<8x32xf32>
    %99 = arith.mulf %94, %98 : vector<8x32xf32>
    %100 = vector.broadcast %44 : vector<1x32xf32> to vector<8x32xf32>
    %101 = arith.mulf %99, %100 : vector<8x32xf32>
    %102 = vector.broadcast %45 : vector<1x32xf32> to vector<8x32xf32>
    %103 = arith.addf %101, %102 : vector<8x32xf32>
    %c0_38 = arith.constant 0 : index
    %c0_39 = arith.constant 0 : index
    %c0_40 = arith.constant 0 : index
    %104 = vector.load %arg10[%c0_38, %c0_39, %c0_40] : memref<1x8x32xf32, #tpu.memory_space<vmem>>, vector<1x8x32xf32>
    %105 = vector.shape_cast %104 : vector<1x8x32xf32> to vector<8x32xf32>
    %106 = vector.shape_cast %103 : vector<8x32xf32> to vector<1x8x32xf32>
    tpu.vector_store %arg10[%c0_38, %c0_39, %c0_40], %106 {strides = array<i32>} : memref<1x8x32xf32, #tpu.memory_space<vmem>>, vector<1x8x32xf32>,
    return
  }
  func.func @transform_0(%arg0: i32) -> (i32, i32, i32) {
    %c0_i32 = arith.constant 0 : i32
    %c0_i32_0 = arith.constant 0 : i32
    %c0_i32_1 = arith.constant 0 : i32
    return %arg0, %c0_i32, %c0_i32_0 : i32, i32, i32
  }
  func.func @transform_1(%arg0: i32) -> (i32, i32, i32) {
    %c0_i32 = arith.constant 0 : i32
    %c0_i32_0 = arith.constant 0 : i32
    %c0_i32_1 = arith.constant 0 : i32
    return %arg0, %c0_i32, %c0_i32_0 : i32, i32, i32
  }
  func.func @transform_2(%arg0: i32) -> (i32, i32) {
    %c0_i32 = arith.constant 0 : i32
    %c0_i32_0 = arith.constant 0 : i32
    %c0_i32_1 = arith.constant 0 : i32
    return %c0_i32, %c0_i32_0 : i32, i32
  }
  func.func @transform_3(%arg0: i32) -> (i32, i32) {
    %c0_i32 = arith.constant 0 : i32
    %c0_i32_0 = arith.constant 0 : i32
    %c0_i32_1 = arith.constant 0 : i32
    return %c0_i32, %c0_i32_0 : i32, i32
  }
  func.func @transform_4(%arg0: i32) -> (i32, i32) {
    %c0_i32 = arith.constant 0 : i32
    %c0_i32_0 = arith.constant 0 : i32
    %c0_i32_1 = arith.constant 0 : i32
    return %c0_i32, %c0_i32_0 : i32, i32
  }
  func.func @transform_5(%arg0: i32) -> (i32, i32) {
    %c0_i32 = arith.constant 0 : i32
    %c0_i32_0 = arith.constant 0 : i32
    %c0_i32_1 = arith.constant 0 : i32
    return %c0_i32, %c0_i32_0 : i32, i32
  }
  func.func @transform_6(%arg0: i32) -> (i32, i32) {
    %c0_i32 = arith.constant 0 : i32
    %c0_i32_0 = arith.constant 0 : i32
    %c0_i32_1 = arith.constant 0 : i32
    return %c0_i32, %c0_i32_0 : i32, i32
  }
  func.func @transform_7(%arg0: i32) -> (i32, i32) {
    %c0_i32 = arith.constant 0 : i32
    %c0_i32_0 = arith.constant 0 : i32
    %c0_i32_1 = arith.constant 0 : i32
    return %c0_i32, %c0_i32_0 : i32, i32
  }
  func.func @transform_8(%arg0: i32) -> (i32, i32) {
    %c0_i32 = arith.constant 0 : i32
    %c0_i32_0 = arith.constant 0 : i32
    %c0_i32_1 = arith.constant 0 : i32
    return %c0_i32, %c0_i32_0 : i32, i32
  }
  func.func @transform_9(%arg0: i32) -> (i32, i32, i32) {
    %c0_i32 = arith.constant 0 : i32
    %c0_i32_0 = arith.constant 0 : i32
    %c0_i32_1 = arith.constant 0 : i32
    return %arg0, %c0_i32, %c0_i32_0 : i32, i32, i32
  }
}

</mosaic_0001>

<llo_original>
// kernel: tpu_custom_call.1
$region0: #{tpu_custom_call.1}
  #allocation0 [shape = 'u32[]', space=smem, size = 0x4, offset = 0x4, fixed_abs, tag = 'smem constant byte address 0x4 - core index']
  #allocation1 [shape = 'u32[144,128]{1,0:T(1,128)}', space=vmem, size = 0x12000, scoped, tag = 'internal scratch']
  %s0 = inlined_call_operand.vmem [shape: f32[2,8,32], index: 0, kind: input, shape index: {}]
  %s1 = inlined_call_operand.vmem [shape: f32[2,8,32], index: 1, kind: input, shape index: {}]
  %s2 = inlined_call_operand.hbm [shape: f32[64,192], index: 2, kind: input, shape index: {}]
  %s3 = inlined_call_operand.hbm [shape: f32[1,192], index: 3, kind: input, shape index: {}]
  %s4 = inlined_call_operand.vmem [shape: f32[64,64], index: 4, kind: input, shape index: {}]
  %s5 = inlined_call_operand.hbm [shape: f32[64,64], index: 5, kind: input, shape index: {}]
  %s6 = inlined_call_operand.vmem [shape: f32[64,32], index: 6, kind: input, shape index: {}]
  %s7 = inlined_call_operand.vmem [shape: f32[4,64], index: 7, kind: input, shape index: {}]
  %s8 = inlined_call_operand.vmem [shape: f32[3,32], index: 8, kind: input, shape index: {}]
  %s9 = inlined_call_operand.hbm [shape: f32[2,8,32], index: 9, kind: output, shape index: {}]
  %s10 = sld [smem:[#allocation0]]
  $region81: #{tpu_custom_call.1} parent=0
    _
  %s12 = ssub.s32 1, %s10
  %s13 = scalar_select 0, %s12, %s10
  $region1: #{tpu_custom_call.1} parent=0
    #allocation2 [shape = 'u8[65536]{0}', space=vmem, size = 0x10000, scoped, tag = 'input window, operand 2, single buffered']
    #allocation3 [shape = 's32[2]{0}', space=sflag, size = 0x8, scoped, tag = 'scoped memory for tpu_custom_call.1']
    #allocation4 [shape = 's32[2]{0}', space=sflag, size = 0x8, scoped, tag = 'scoped memory for tpu_custom_call.1']
    #allocation5 [shape = 'u8[1024]{0}', space=vmem, size = 0x400, scoped, tag = 'input window, operand 3, single buffered']
    #allocation6 [shape = 's32[1]{0}', space=sflag, size = 0x4, scoped, tag = 'scoped memory for tpu_custom_call.1']
    #allocation7 [shape = 'u8[32768]{0}', space=vmem, size = 0x8000, scoped, tag = 'input window, operand 5, single buffered']
    #allocation8 [shape = 'u8[8192]{0}', space=vmem, size = 0x2000, scoped, tag = 'output window, operand 0']
    %14 = vsyncpa [#allocation3], 0
    %15 = vsyncpa [#allocation6], 0
    %16 = vsyncpa [#allocation4], 0
    %s17 = scalar_lea.sflag [#allocation4], 1
    %18 = vsyncpa %s17, 0
    loop: start=0, step=1, limit=4
    $region2: #{tpu_custom_call.1} parent=1 // loop_pre_header
      _
    $region3: #{tpu_custom_call.1} parent=1 // loop_header
      %s20 = sphi 0, %s24
      %p21 = scmp.ge.s32.totalorder %s20, 4
      %s30 = sphi 0, %s32
      %s33 = sphi 0, %s30
      %s34 = sphi 0, %s33
      %s50 = sphi 0, %s34
      %s56 = sphi 0, %s58
      %s59 = sphi 0, %s56
      %s60 = sphi 0, %s59
      %s76 = sphi 0, %s60
      %s80 = sphi 0, %s80
      %s82 = sphi 0, %s80
      %s83 = sphi 0, %s82
      %s97 = sphi 0, %s83
      %s101 = sphi 0, %s101
      %s103 = sphi 0, %s101
      %s104 = sphi 0, %s103
      %s118 = sphi 0, %s104
      %s122 = sphi 0, %s122
      %s124 = sphi 0, %s122
      %s125 = sphi 0, %s124
      %s139 = sphi 0, %s125
      %s143 = sphi 0, %s143
      %s145 = sphi 0, %s143
      %s146 = sphi 0, %s145
      %s160 = sphi 0, %s146
      %s164 = sphi 0, %s164
      %s166 = sphi 0, %s164
      %s167 = sphi 0, %s166
      %s181 = sphi 0, %s167
      %s185 = sphi 0, %s185
      %s187 = sphi 0, %s185
      %s188 = sphi 0, %s187
      %s202 = sphi 0, %s188
      %s206 = sphi 0, %s206
      %s208 = sphi 0, %s206
      %s209 = sphi 0, %s208
      %s223 = sphi 0, %s209
      %s229 = sphi 0, %s231
      %s232 = sphi 0, %s229
      %s233 = sphi 0, %s232
      %s249 = sphi 0, %s233
    $region4: #{tpu_custom_call.1} parent=1 // loop_header_branch
      %23 = sbr.rel (%p21) target = $region8
    $region5: #{tpu_custom_call.1} parent=1 // loop_body
      %s25 = ssub.s32 %s20, 1
      %s26 = ssub.s32 %s20, 2
      %s27 = sadd.s32 %s20, 1
      %s28 = ssub.s32 %s20, %s27
      %p29 = scmp.eq.s32.totalorder %s28, 0
      %s31 = sadd.s32 %s30, 1
      %s32 = scalar_select %p29, %s30, %s31
      %p35 = pneg %p29
      %p36 = scmp.eq.s32.totalorder %s20, 1
      %p37 = por %p35, %p36
      %p38 = scmp.ne.s32.totalorder %s30, %s33
      %p39 = scmp.eq.s32.totalorder %s20, 0
      %p40 = por %p38, %p39
      %p41 = scmp.ne.s32.totalorder %s30, %s33
      %p42 = scmp.eq.s32.totalorder %s25, 1
      %p43 = por %p41, %p42
      %p44 = scmp.ne.s32.totalorder %s33, %s34
      %p45 = scmp.eq.s32.totalorder %s25, 0
      %p46 = por %p44, %p45
      %p47 = scmp.ne.s32.totalorder %s33, %s34
      %p48 = scmp.eq.s32.totalorder %s26, 1
      %p49 = por %p47, %p48
      %p51 = scmp.ne.s32.totalorder %s34, %s50
      %p52 = scmp.eq.s32.totalorder %s26, 0
      %p53 = por %p51, %p52
      %s54 = ssub.s32 %s20, %s27
      %p55 = scmp.eq.s32.totalorder %s54, 0
      %s57 = sadd.s32 %s56, 1
      %s58 = scalar_select %p55, %s56, %s57
      %p61 = pneg %p55
      %p62 = scmp.eq.s32.totalorder %s20, 1
      %p63 = por %p61, %p62
      %p64 = scmp.ne.s32.totalorder %s56, %s59
      %p65 = scmp.eq.s32.totalorder %s20, 0
      %p66 = por %p64, %p65
      %p67 = scmp.ne.s32.totalorder %s56, %s59
      %p68 = scmp.eq.s32.totalorder %s25, 1
      %p69 = por %p67, %p68
      %p70 = scmp.ne.s32.totalorder %s59, %s60
      %p71 = scmp.eq.s32.totalorder %s25, 0
      %p72 = por %p70, %p71
      %p73 = scmp.ne.s32.totalorder %s59, %s60
      %p74 = scmp.eq.s32.totalorder %s26, 1
      %p75 = por %p73, %p74
      %p77 = scmp.ne.s32.totalorder %s60, %s76
      %p78 = scmp.eq.s32.totalorder %s26, 0
      %p79 = por %p77, %p78
      %s81 = sadd.s32 %s80, 1
      %p84 = scmp.eq.s32.totalorder %s20, 1
      %p85 = scmp.ne.s32.totalorder %s80, %s82
      %p86 = scmp.eq.s32.totalorder %s20, 0
      %p87 = por %p85, %p86
      %p88 = scmp.ne.s32.totalorder %s80, %s82
      %p89 = scmp.eq.s32.totalorder %s25, 1
      %p90 = por %p88, %p89
      %p91 = scmp.ne.s32.totalorder %s82, %s83
      %p92 = scmp.eq.s32.totalorder %s25, 0
      %p93 = por %p91, %p92
      %p94 = scmp.ne.s32.totalorder %s82, %s83
      %p95 = scmp.eq.s32.totalorder %s26, 1
      %p96 = por %p94, %p95
      %p98 = scmp.ne.s32.totalorder %s83, %s97
      %p99 = scmp.eq.s32.totalorder %s26, 0
      %p100 = por %p98, %p99
      %s102 = sadd.s32 %s101, 1
      %p105 = scmp.eq.s32.totalorder %s20, 1
      %p106 = scmp.ne.s32.totalorder %s101, %s103
      %p107 = scmp.eq.s32.totalorder %s20, 0
      %p108 = por %p106, %p107
      %p109 = scmp.ne.s32.totalorder %s101, %s103
      %p110 = scmp.eq.s32.totalorder %s25, 1
      %p111 = por %p109, %p110
      %p112 = scmp.ne.s32.totalorder %s103, %s104
      %p113 = scmp.eq.s32.totalorder %s25, 0
      %p114 = por %p112, %p113
      %p115 = scmp.ne.s32.totalorder %s103, %s104
      %p116 = scmp.eq.s32.totalorder %s26, 1
      %p117 = por %p115, %p116
      %p119 = scmp.ne.s32.totalorder %s104, %s118
      %p120 = scmp.eq.s32.totalorder %s26, 0
      %p121 = por %p119, %p120
      %s123 = sadd.s32 %s122, 1
      %p126 = scmp.eq.s32.totalorder %s20, 1
      %p127 = scmp.ne.s32.totalorder %s122, %s124
      %p128 = scmp.eq.s32.totalorder %s20, 0
      %p129 = por %p127, %p128
      %p130 = scmp.ne.s32.totalorder %s122, %s124
      %p131 = scmp.eq.s32.totalorder %s25, 1
      %p132 = por %p130, %p131
      %p133 = scmp.ne.s32.totalorder %s124, %s125
      %p134 = scmp.eq.s32.totalorder %s25, 0
      %p135 = por %p133, %p134
      %p136 = scmp.ne.s32.totalorder %s124, %s125
      %p137 = scmp.eq.s32.totalorder %s26, 1
      %p138 = por %p136, %p137
      %p140 = scmp.ne.s32.totalorder %s125, %s139
      %p141 = scmp.eq.s32.totalorder %s26, 0
      %p142 = por %p140, %p141
      %s144 = sadd.s32 %s143, 1
      %p147 = scmp.eq.s32.totalorder %s20, 1
      %p148 = scmp.ne.s32.totalorder %s143, %s145
      %p149 = scmp.eq.s32.totalorder %s20, 0
      %p150 = por %p148, %p149
      %p151 = scmp.ne.s32.totalorder %s143, %s145
      %p152 = scmp.eq.s32.totalorder %s25, 1
      %p153 = por %p151, %p152
      %p154 = scmp.ne.s32.totalorder %s145, %s146
      %p155 = scmp.eq.s32.totalorder %s25, 0
      %p156 = por %p154, %p155
      %p157 = scmp.ne.s32.totalorder %s145, %s146
      %p158 = scmp.eq.s32.totalorder %s26, 1
      %p159 = por %p157, %p158
      %p161 = scmp.ne.s32.totalorder %s146, %s160
      %p162 = scmp.eq.s32.totalorder %s26, 0
      %p163 = por %p161, %p162
      %s165 = sadd.s32 %s164, 1
      %p168 = scmp.eq.s32.totalorder %s20, 1
      %p169 = scmp.ne.s32.totalorder %s164, %s166
      %p170 = scmp.eq.s32.totalorder %s20, 0
      %p171 = por %p169, %p170
      %p172 = scmp.ne.s32.totalorder %s164, %s166
      %p173 = scmp.eq.s32.totalorder %s25, 1
      %p174 = por %p172, %p173
      %p175 = scmp.ne.s32.totalorder %s166, %s167
      %p176 = scmp.eq.s32.totalorder %s25, 0
      %p177 = por %p175, %p176
      %p178 = scmp.ne.s32.totalorder %s166, %s167
      %p179 = scmp.eq.s32.totalorder %s26, 1
      %p180 = por %p178, %p179
      %p182 = scmp.ne.s32.totalorder %s167, %s181
      %p183 = scmp.eq.s32.totalorder %s26, 0
      %p184 = por %p182, %p183
      %s186 = sadd.s32 %s185, 1
      %p189 = scmp.eq.s32.totalorder %s20, 1
      %p190 = scmp.ne.s32.totalorder %s185, %s187
      %p191 = scmp.eq.s32.totalorder %s20, 0
      %p192 = por %p190, %p191
      %p193 = scmp.ne.s32.totalorder %s185, %s187
      %p194 = scmp.eq.s32.totalorder %s25, 1
      %p195 = por %p193, %p194
      %p196 = scmp.ne.s32.totalorder %s187, %s188
      %p197 = scmp.eq.s32.totalorder %s25, 0
      %p198 = por %p196, %p197
      %p199 = scmp.ne.s32.totalorder %s187, %s188
      %p200 = scmp.eq.s32.totalorder %s26, 1
      %p201 = por %p199, %p200
      %p203 = scmp.ne.s32.totalorder %s188, %s202
      %p204 = scmp.eq.s32.totalorder %s26, 0
      %p205 = por %p203, %p204
      %s207 = sadd.s32 %s206, 1
      %p210 = scmp.eq.s32.totalorder %s20, 1
      %p211 = scmp.ne.s32.totalorder %s206, %s208
      %p212 = scmp.eq.s32.totalorder %s20, 0
      %p213 = por %p211, %p212
      %p214 = scmp.ne.s32.totalorder %s206, %s208
      %p215 = scmp.eq.s32.totalorder %s25, 1
      %p216 = por %p214, %p215
      %p217 = scmp.ne.s32.totalorder %s208, %s209
      %p218 = scmp.eq.s32.totalorder %s25, 0
      %p219 = por %p217, %p218
      %p220 = scmp.ne.s32.totalorder %s208, %s209
      %p221 = scmp.eq.s32.totalorder %s26, 1
      %p222 = por %p220, %p221
      %p224 = scmp.ne.s32.totalorder %s209, %s223
      %p225 = scmp.eq.s32.totalorder %s26, 0
      %p226 = por %p224, %p225
      %s227 = ssub.s32 %s20, %s27
      %p228 = scmp.eq.s32.totalorder %s227, 0
      %s230 = sadd.s32 %s229, 1
      %s231 = scalar_select %p228, %s229, %s230
      %p234 = pneg %p228
      %p235 = scmp.eq.s32.totalorder %s20, 1
      %p236 = por %p234, %p235
      %p237 = scmp.ne.s32.totalorder %s229, %s232
      %p238 = scmp.eq.s32.totalorder %s20, 0
      %p239 = por %p237, %p238
      %p240 = scmp.ne.s32.totalorder %s229, %s232
      %p241 = scmp.eq.s32.totalorder %s25, 1
      %p242 = por %p240, %p241
      %p243 = scmp.ne.s32.totalorder %s232, %s233
      %p244 = scmp.eq.s32.totalorder %s25, 0
      %p245 = por %p243, %p244
      %p246 = scmp.ne.s32.totalorder %s232, %s233
      %p247 = scmp.eq.s32.totalorder %s26, 1
      %p248 = por %p246, %p247
      %p250 = scmp.ne.s32.totalorder %s233, %s249
      %p251 = scmp.eq.s32.totalorder %s26, 0
      %p252 = por %p250, %p251
      %p253 = scmp.le.s32.totalorder 1, %s20
      %p254 = scmp.lt.s32.totalorder %s20, 3
      %p255 = pnand %p253, %p254
      %p256 = pneg %p255
      // Predicated region
      $region9: #{tpu_custom_call.1} parent=5 // pred_check
        _
      $region10: #{tpu_custom_call.1} parent=5 // pred_check_branch
        %258 = sbr.rel (%p255) target = $region12
      $region11: #{tpu_custom_call.1} parent=5 // pred_region
        %s259 = ssub.s32 %s20, 1
        // Predicated region
        $region13: #{tpu_custom_call.1} parent=11 // pred_check
          %p260 = pneg %p93
        $region14: #{tpu_custom_call.1} parent=11 // pred_check_branch
          %262 = sbr.rel (%p260) target = $region16
        $region15: #{tpu_custom_call.1} parent=11 // pred_region
          %s264 = ssub.s32 2048, 2048
          %265 = vsyncadd [#allocation3], %s264
          %s266 = sshll.u32 [#allocation2], 4
          %s267 = int_to_ptr.vmem [resolvable:$true] %s266
          %272 = dma.hbm_to_vmem [thread:$0]  %s2, 2048, %s267, [#allocation3], 256, 256, 16
        $region16: #{tpu_custom_call.1} parent=11 // pred_fallthru
          _
        // Predicated region
        $region17: #{tpu_custom_call.1} parent=11 // pred_check
          %p273 = pneg %p114
        $region18: #{tpu_custom_call.1} parent=11 // pred_check_branch
          %275 = sbr.rel (%p273) target = $region20
        $region19: #{tpu_custom_call.1} parent=11 // pred_region
          %s277 = ssub.s32 32, 32
          %278 = vsyncadd [#allocation6], %s277
          %s280 = sshll.u32 [#allocation5], 4
          %s281 = int_to_ptr.vmem [resolvable:$true] %s280
          %283 = dma.hbm_to_vmem [thread:$0]  %s3, 32, %s281, [#allocation6]
        $region20: #{tpu_custom_call.1} parent=11 // pred_fallthru
          _
        // Predicated region
        $region21: #{tpu_custom_call.1} parent=11 // pred_check
          %p284 = pneg %p135
        $region22: #{tpu_custom_call.1} parent=11 // pred_check_branch
          %286 = sbr.rel (%p284) target = $region24
        $region23: #{tpu_custom_call.1} parent=11 // pred_region
          _
        $region24: #{tpu_custom_call.1} parent=11 // pred_fallthru
          _
        // Predicated region
        $region25: #{tpu_custom_call.1} parent=11 // pred_check
          %p287 = pneg %p156
        $region26: #{tpu_custom_call.1} parent=11 // pred_check_branch
          %289 = sbr.rel (%p287) target = $region28
        $region27: #{tpu_custom_call.1} parent=11 // pred_region
          %s291 = ssub.s32 1024, 1024
          %292 = vsyncadd [#allocation6], %s291
          %s293 = sshll.u32 [#allocation7], 4
          %s294 = int_to_ptr.vmem [resolvable:$true] %s293
          %299 = dma.hbm_to_vmem [thread:$0]  %s5, 1024, %s294, [#allocation6], 128, 128, 8
        $region28: #{tpu_custom_call.1} parent=11 // pred_fallthru
          _
        // Predicated region
        $region29: #{tpu_custom_call.1} parent=11 // pred_check
          %p300 = pneg %p177
        $region30: #{tpu_custom_call.1} parent=11 // pred_check_branch
          %302 = sbr.rel (%p300) target = $region32
        $region31: #{tpu_custom_call.1} parent=11 // pred_region
          _
        $region32: #{tpu_custom_call.1} parent=11 // pred_fallthru
          _
        // Predicated region
        $region33: #{tpu_custom_call.1} parent=11 // pred_check
          %p303 = pneg %p198
        $region34: #{tpu_custom_call.1} parent=11 // pred_check_branch
          %305 = sbr.rel (%p303) target = $region36
        $region35: #{tpu_custom_call.1} parent=11 // pred_region
          _
        $region36: #{tpu_custom_call.1} parent=11 // pred_fallthru
          _
        // Predicated region
        $region37: #{tpu_custom_call.1} parent=11 // pred_check
          %p306 = pneg %p219
        $region38: #{tpu_custom_call.1} parent=11 // pred_check_branch
          %308 = sbr.rel (%p306) target = $region40
        $region39: #{tpu_custom_call.1} parent=11 // pred_region
          _
        $region40: #{tpu_custom_call.1} parent=11 // pred_fallthru
          _
      $region12: #{tpu_custom_call.1} parent=5 // pred_fallthru
        _
      %p309 = scmp.lt.s32.totalorder %s20, 2
      // Predicated region
      $region41: #{tpu_custom_call.1} parent=5 // pred_check
        %p310 = pneg %p309
      $region42: #{tpu_custom_call.1} parent=5 // pred_check_branch
        %312 = sbr.rel (%p310) target = $region44
      $region43: #{tpu_custom_call.1} parent=5 // pred_region
        // Predicated region
        $region45: #{tpu_custom_call.1} parent=43 // pred_check
          %p313 = pneg %p40
        $region46: #{tpu_custom_call.1} parent=43 // pred_check_branch
          %315 = sbr.rel (%p313) target = $region48
        $region47: #{tpu_custom_call.1} parent=43 // pred_region
          %p316 = scmp.lt.s32.totalorder %s20, 1
          %s317 = scalar_select %p316, %s20, 1
          %s318 = smul.addr %s317, 8
          %s319 = scalar_lea.vmem %s0, %s318
        $region48: #{tpu_custom_call.1} parent=43 // pred_fallthru
          _
        // Predicated region
        $region49: #{tpu_custom_call.1} parent=43 // pred_check
          %p320 = pneg %p66
        $region50: #{tpu_custom_call.1} parent=43 // pred_check_branch
          %322 = sbr.rel (%p320) target = $region52
        $region51: #{tpu_custom_call.1} parent=43 // pred_region
          %p323 = scmp.lt.s32.totalorder %s20, 1
          %s324 = scalar_select %p323, %s20, 1
          %s325 = smul.addr %s324, 8
          %s326 = scalar_lea.vmem %s1, %s325
        $region52: #{tpu_custom_call.1} parent=43 // pred_fallthru
          _
      $region44: #{tpu_custom_call.1} parent=5 // pred_fallthru
        _
      %p327 = scmp.le.s32.totalorder 1, %s20
      %p328 = scmp.lt.s32.totalorder %s20, 3
      %p329 = pnand %p327, %p328
      %p330 = pneg %p329
      // Predicated region
      $region53: #{tpu_custom_call.1} parent=5 // pred_check
        _
      $region54: #{tpu_custom_call.1} parent=5 // pred_check_branch
        %332 = sbr.rel (%p329) target = $region56
      $region55: #{tpu_custom_call.1} parent=5 // pred_region
        %s333 = ssub.s32 %s20, 1
        // Predicated region
        $region57: #{tpu_custom_call.1} parent=55 // pred_check
          %p334 = pneg %p93
        $region58: #{tpu_custom_call.1} parent=55 // pred_check_branch
          %336 = sbr.rel (%p334) target = $region60
        $region59: #{tpu_custom_call.1} parent=55 // pred_region
          %337 = dma.done [#allocation3], 2048
        $region60: #{tpu_custom_call.1} parent=55 // pred_fallthru
          _
        // Predicated region
        $region61: #{tpu_custom_call.1} parent=55 // pred_check
          %p338 = pneg %p114
        $region62: #{tpu_custom_call.1} parent=55 // pred_check_branch
          %340 = sbr.rel (%p338) target = $region64
        $region63: #{tpu_custom_call.1} parent=55 // pred_region
          %341 = dma.done [#allocation6], 32
        $region64: #{tpu_custom_call.1} parent=55 // pred_fallthru
          _
        // Predicated region
        $region65: #{tpu_custom_call.1} parent=55 // pred_check
          %p342 = pneg %p156
        $region66: #{tpu_custom_call.1} parent=55 // pred_check_branch
          %344 = sbr.rel (%p342) target = $region68
        $region67: #{tpu_custom_call.1} parent=55 // pred_region
          %345 = dma.done [#allocation6], 1024
        $region68: #{tpu_custom_call.1} parent=55 // pred_fallthru
          _
        %p346 = scmp.lt.s32.totalorder %s25, 1
        %s347 = scalar_select %p346, %s25, 1
        %s348 = smul.addr %s347, 8
        %s349 = scalar_lea.vmem %s0, %s348
        %p350 = pneg %p46
        %p351 = pneg %p43
        %p352 = scmp.lt.s32.totalorder %s25, 1
        %s353 = scalar_select %p352, %s25, 1
        %s354 = smul.addr %s353, 8
        %s355 = scalar_lea.vmem %s1, %s354
        %p356 = pneg %p72
        %p357 = pneg %p69
        %p358 = pneg %p93
        %p359 = pneg %p90
        %p360 = pneg %p114
        %p361 = pneg %p111
        %p362 = pneg %p135
        %p363 = pneg %p132
        %p364 = pneg %p156
        %p365 = pneg %p153
        %p366 = pneg %p177
        %p367 = pneg %p174
        %p368 = pneg %p198
        %p369 = pneg %p195
        %p370 = pneg %p219
        %p371 = pneg %p216
        %p372 = pneg %p245
        %p373 = pneg %p242
        %s374 = sand.u32 %s232, 1
        %s375 = scalar_lea.sflag [#allocation4], %s374
        %s376 = sand.u32 %s232, 1
        %s377 = smul.addr %s376, 8
        %s378 = scalar_lea.vmem [#allocation8], %s377
        %p379 = scmp.lt.s32.totalorder %s25, 1
        %s380 = scalar_select %p379, %s25, 1
        %s381 = smul.addr %s380, 8
        %s382 = scalar_lea.vmem %s0, %s381
        %p383 = scmp.lt.s32.totalorder %s25, 1
        %s384 = scalar_select %p383, %s25, 1
        %s385 = smul.addr %s384, 8
        %s386 = scalar_lea.vmem %s1, %s385
        %v387 = vld [vmem:[%s382] sm:$0xff]
        %v388 = vld [vmem:[%s386] sm:$0xff]
        %390 = vrot.lane.b32.xlu0 %v388, 32
        %v391 = vpop.permute.xlu0 %390
        %vm393 = vcmask 261120
        %v394 = vsel %vm393, %v387, %v391
        %v395 = vld [vmem:[#allocation2] sm:$0xff]
        %v396 = vld [vmem:[#allocation2 + $0x8] sm:$0xff]
        %v397 = vld [vmem:[#allocation2 + $0x10] sm:$0xff]
        %v398 = vld [vmem:[#allocation2 + $0x18] sm:$0xff]
        %v399 = vld [vmem:[#allocation2 + $0x20] sm:$0xff]
        %v400 = vld [vmem:[#allocation2 + $0x28] sm:$0xff]
        %v401 = vld [vmem:[#allocation2 + $0x30] sm:$0xff]
        %v402 = vld [vmem:[#allocation2 + $0x38] sm:$0xff]
        %v403 = vld [vmem:[#allocation2 + $0x40] sm:$0xff]
        %v404 = vld [vmem:[#allocation2 + $0x48] sm:$0xff]
        %v405 = vld [vmem:[#allocation2 + $0x50] sm:$0xff]
        %v406 = vld [vmem:[#allocation2 + $0x58] sm:$0xff]
        %v407 = vld [vmem:[#allocation2 + $0x60] sm:$0xff]
        %v408 = vld [vmem:[#allocation2 + $0x68] sm:$0xff]
        %v409 = vld [vmem:[#allocation2 + $0x70] sm:$0xff]
        %v410 = vld [vmem:[#allocation2 + $0x78] sm:$0xff]
        %v411 = vld [vmem:[#allocation5] sm:$0x3]
        %v413 = vlaneseq
        %v414 = vshrl.u32 %v413, 7
        %v415 = vsub.s32 0, %v414
        %v416 = vrot.slane %v411, %v415
        %v417 = vlaneseq
        %v418 = vshrl.u32 %v417, 7
        %v419 = vsub.s32 1, %v418
        %v420 = vrot.slane %v411, %v419
        %vm423 = vcmask 523264
        %v425 = vsel %vm423, %v394, 0
        %427 = vmatprep.subr.mxu0 0.0
        %428 = vmatpush1.msra.mxu0 0.0
        %429 = vmatprep.subr.mxu0 0.0
        %430 = vmatpush1.msra.mxu0 0.0
        %431 = vmatprep.subr.mxu0 0.0
        %432 = vmatpush1.msra.mxu0 0.0
        %433 = vmatprep.subr.mxu0 0.0
        %434 = vmatpush1.msra.mxu0 0.0
        %435 = vmatprep.subr.mxu0 0.0
        %436 = vmatpush1.msra.mxu0 0.0
        %437 = vmatprep.subr.mxu0 0.0
        %438 = vmatpush1.msra.mxu0 0.0
        %439 = vmatprep.subr.mxu0 0.0
        %440 = vmatpush1.msra.mxu0 0.0
        %441 = vmatprep.subr.mxu0 0.0
        %442 = vmatpush1.msra.mxu0 0.0
        %443 = vmatprep.subr.mxu0 %v410
        %444 = vmatpush1.msra.mxu0 %v409
        %445 = vmatprep.subr.mxu0 %v408
        %446 = vmatpush1.msra.mxu0 %v407
        %447 = vmatprep.subr.mxu0 %v406
        %448 = vmatpush1.msra.mxu0 %v405
        %449 = vmatprep.subr.mxu0 %v404
        %450 = vmatpush1.msra.mxu0 %v403
        %451 = vmatprep.subr.mxu0 %v402
        %452 = vmatpush1.msra.mxu0 %v401
        %453 = vmatprep.subr.mxu0 %v400
        %454 = vmatpush1.msra.mxu0 %v399
        %455 = vmatprep.subr.mxu0 %v398
        %456 = vmatpush1.msra.mxu0 %v397
        %457 = vmatprep.subr.mxu0 %v396
        %458 = vmatpush1.msra.mxu0 %v395
        %459 = vmatprep.subr.mxu0 0.0
        %460 = vmatpush2.msra.mxu0 0.0
        %461 = vmatprep.subr.mxu0 0.0
        %462 = vmatpush2.msra.mxu0 0.0
        %463 = vmatprep.subr.mxu0 0.0
        %464 = vmatpush2.msra.mxu0 0.0
        %465 = vmatprep.subr.mxu0 0.0
        %466 = vmatpush2.msra.mxu0 0.0
        %467 = vmatprep.subr.mxu0 0.0
        %468 = vmatpush2.msra.mxu0 0.0
        %469 = vmatprep.subr.mxu0 0.0
        %470 = vmatpush2.msra.mxu0 0.0
        %471 = vmatprep.subr.mxu0 0.0
        %472 = vmatpush2.msra.mxu0 0.0
        %473 = vmatprep.subr.mxu0 0.0
        %474 = vmatpush2.msra.mxu0 0.0
        %475 = vmatprep.subr.mxu0 0.0
        %476 = vmatpush2.msra.mxu0 0.0
        %477 = vmatprep.subr.mxu0 0.0
        %478 = vmatpush2.msra.mxu0 0.0
        %479 = vmatprep.subr.mxu0 0.0
        %480 = vmatpush2.msra.mxu0 0.0
        %481 = vmatprep.subr.mxu0 0.0
        %482 = vmatpush2.msra.mxu0 0.0
        %483 = vmatprep.subr.mxu0 0.0
        %484 = vmatpush2.msra.mxu0 0.0
        %485 = vmatprep.subr.mxu0 0.0
        %486 = vmatpush2.msra.mxu0 0.0
        %487 = vmatprep.subr.mxu0 0.0
        %488 = vmatpush2.msra.mxu0 0.0
        %489 = vmatprep.subr.mxu0 0.0
        %490 = vmatpush2.msra.mxu0 0.0
        %491 = vmatprep.mubr.f32.mxu0 0.0
        %492 = vmatmul.mubr.f32.gmra.mxu0 %v425
        %v493 = vpop.f32.mrf.mxu0
        %v494 = vadd.f32 %v416, %v493
        %v495 = vpop.f32.mrf.mxu0
        %v496 = vadd.f32 %v420, %v495
        %497 = vdwg.mxu0
        %499 = vrot.lane.b32.xlu0 %v494, 112
        %v500 = vpop.permute.xlu0 %499
        %502 = vrot.lane.b32.xlu0 %v494, 96
        %v503 = vpop.permute.xlu0 %502
        %505 = vrot.lane.b32.xlu0 %v494, 80
        %v506 = vpop.permute.xlu0 %505
        %v508 = vcombine.low %v494, %v503
        %v509 = vcombine.high %v494, %v503
        %v511 = vunpack.c.l.s4 1983009808
        %v512 = vunpack.c.0.s8 %v511
        %v513 = vlaneseq
        %v514 = vshrl.u32 %v513, 7
        %v515 = vsub.s32 %v512, %v514
        %v516 = vrot.slane %v508, %v515
        %v518 = vunpack.c.l.s4 1983009808
        %v519 = vunpack.c.0.s8 %v518
        %v520 = vlaneseq
        %v521 = vshrl.u32 %v520, 7
        %v522 = vsub.s32 %v519, %v521
        %v523 = vrot.slane %v509, %v522
        %v524 = vcombine.low %v500, %v506
        %v525 = vcombine.high %v500, %v506
        %v527 = vunpack.c.l.s4 1983009808
        %v528 = vunpack.c.0.s8 %v527
        %v529 = vlaneseq
        %v530 = vshrl.u32 %v529, 7
        %v531 = vsub.s32 %v528, %v530
        %v532 = vrot.slane %v524, %v531
        %v534 = vunpack.c.l.s4 1983009808
        %v535 = vunpack.c.0.s8 %v534
        %v536 = vlaneseq
        %v537 = vshrl.u32 %v536, 7
        %v538 = vsub.s32 %v535, %v537
        %v539 = vrot.slane %v525, %v538
        %v540 = vcombine.low %v516, %v532
        %v541 = vcombine.high %v516, %v532
        %v543 = vunpack.c.l.s4 1934713408
        %v544 = vunpack.c.0.s8 %v543
        %v545 = vlaneseq
        %v546 = vshrl.u32 %v545, 7
        %v547 = vsub.s32 %v544, %v546
        %v548 = vrot.slane %v540, %v547
        %v550 = vunpack.c.l.s4 1934713408
        %v551 = vunpack.c.0.s8 %v550
        %v552 = vlaneseq
        %v553 = vshrl.u32 %v552, 7
        %v554 = vsub.s32 %v551, %v553
        %v555 = vrot.slane %v541, %v554
        %v556 = vcombine.low %v523, %v539
        %v557 = vcombine.high %v523, %v539
        %v559 = vunpack.c.l.s4 1934713408
        %v560 = vunpack.c.0.s8 %v559
        %v561 = vlaneseq
        %v562 = vshrl.u32 %v561, 7
        %v563 = vsub.s32 %v560, %v562
        %v564 = vrot.slane %v556, %v563
        %v566 = vunpack.c.l.s4 1934713408
        %v567 = vunpack.c.0.s8 %v566
        %v568 = vlaneseq
        %v569 = vshrl.u32 %v568, 7
        %v570 = vsub.s32 %v567, %v569
        %v571 = vrot.slane %v557, %v570
        %v572 = vcombine.high %v548, 0.0
        %v573 = vcombine.high %v555, 0.0
        %v574 = vcombine.high %v564, 0.0
        %v575 = vcombine.high %v571, 0.0
        %v576 = vcombine.low %v548, %v555
        %v578 = vunpack.c.l.s4 1983009808
        %v579 = vunpack.c.0.s8 %v578
        %v580 = vlaneseq
        %v581 = vshrl.u32 %v580, 7
        %v582 = vsub.s32 %v579, %v581
        %v583 = vrot.slane %v576, %v582
        %v584 = vcombine.low %v572, %v573
        %v586 = vunpack.c.l.s4 1983009808
        %v587 = vunpack.c.0.s8 %v586
        %v588 = vlaneseq
        %v589 = vshrl.u32 %v588, 7
        %v590 = vsub.s32 %v587, %v589
        %v591 = vrot.slane %v584, %v590
        %v592 = vcombine.low %v564, %v571
        %v594 = vunpack.c.l.s4 1983009808
        %v595 = vunpack.c.0.s8 %v594
        %v596 = vlaneseq
        %v597 = vshrl.u32 %v596, 7
        %v598 = vsub.s32 %v595, %v597
        %v599 = vrot.slane %v592, %v598
        %v600 = vcombine.low %v574, %v575
        %v602 = vunpack.c.l.s4 1983009808
        %v603 = vunpack.c.0.s8 %v602
        %v604 = vlaneseq
        %v605 = vshrl.u32 %v604, 7
        %v606 = vsub.s32 %v603, %v605
        %v607 = vrot.slane %v600, %v606
        %v608 = vcombine.low %v583, %v591
        %v609 = vcombine.high %v583, %v591
        %v611 = vunpack.c.l.s4 1934713408
        %v612 = vunpack.c.0.s8 %v611
        %v613 = vlaneseq
        %v614 = vshrl.u32 %v613, 7
        %v615 = vsub.s32 %v612, %v614
        %v616 = vrot.slane %v608, %v615
        %v618 = vunpack.c.l.s4 1934713408
        %v619 = vunpack.c.0.s8 %v618
        %v620 = vlaneseq
        %v621 = vshrl.u32 %v620, 7
        %v622 = vsub.s32 %v619, %v621
        %v623 = vrot.slane %v609, %v622
        %v624 = vcombine.low %v599, %v607
        %v625 = vcombine.high %v599, %v607
        %v627 = vunpack.c.l.s4 1934713408
        %v628 = vunpack.c.0.s8 %v627
        %v629 = vlaneseq
        %v630 = vshrl.u32 %v629, 7
        %v631 = vsub.s32 %v628, %v630
        %v632 = vrot.slane %v624, %v631
        %v634 = vunpack.c.l.s4 1934713408
        %v635 = vunpack.c.0.s8 %v634
        %v636 = vlaneseq
        %v637 = vshrl.u32 %v636, 7
        %v638 = vsub.s32 %v635, %v637
        %v639 = vrot.slane %v625, %v638
        %v640 = vcombine.low %v616, %v632
        %v641 = vcombine.high %v616, %v632
        %v642 = vcombine.low %v623, %v639
        %v643 = vcombine.high %v623, %v639
        %644 = vrot.lane.b32.xlu0 %v494, 64
        %v645 = vpop.permute.xlu0 %644
        %646 = vrot.lane.b32.xlu0 %v500, 64
        %v647 = vpop.permute.xlu0 %646
        %648 = vrot.lane.b32.xlu0 %v503, 64
        %v649 = vpop.permute.xlu0 %648
        %650 = vrot.lane.b32.xlu0 %v506, 64
        %v651 = vpop.permute.xlu0 %650
        %v656 = vcombine.low %v645, %v649
        %v657 = vcombine.high %v645, %v649
        %v659 = vunpack.c.l.s4 1983009808
        %v660 = vunpack.c.0.s8 %v659
        %v661 = vlaneseq
        %v662 = vshrl.u32 %v661, 7
        %v663 = vsub.s32 %v660, %v662
        %v664 = vrot.slane %v656, %v663
        %v666 = vunpack.c.l.s4 1983009808
        %v667 = vunpack.c.0.s8 %v666
        %v668 = vlaneseq
        %v669 = vshrl.u32 %v668, 7
        %v670 = vsub.s32 %v667, %v669
        %v671 = vrot.slane %v657, %v670
        %v672 = vcombine.low %v647, %v651
        %v673 = vcombine.high %v647, %v651
        %v675 = vunpack.c.l.s4 1983009808
        %v676 = vunpack.c.0.s8 %v675
        %v677 = vlaneseq
        %v678 = vshrl.u32 %v677, 7
        %v679 = vsub.s32 %v676, %v678
        %v680 = vrot.slane %v672, %v679
        %v682 = vunpack.c.l.s4 1983009808
        %v683 = vunpack.c.0.s8 %v682
        %v684 = vlaneseq
        %v685 = vshrl.u32 %v684, 7
        %v686 = vsub.s32 %v683, %v685
        %v687 = vrot.slane %v673, %v686
        %v688 = vcombine.low %v664, %v680
        %v689 = vcombine.high %v664, %v680
        %v691 = vunpack.c.l.s4 1934713408
        %v692 = vunpack.c.0.s8 %v691
        %v693 = vlaneseq
        %v694 = vshrl.u32 %v693, 7
        %v695 = vsub.s32 %v692, %v694
        %v696 = vrot.slane %v688, %v695
        %v698 = vunpack.c.l.s4 1934713408
        %v699 = vunpack.c.0.s8 %v698
        %v700 = vlaneseq
        %v701 = vshrl.u32 %v700, 7
        %v702 = vsub.s32 %v699, %v701
        %v703 = vrot.slane %v689, %v702
        %v704 = vcombine.low %v671, %v687
        %v705 = vcombine.high %v671, %v687
        %v707 = vunpack.c.l.s4 1934713408
        %v708 = vunpack.c.0.s8 %v707
        %v709 = vlaneseq
        %v710 = vshrl.u32 %v709, 7
        %v711 = vsub.s32 %v708, %v710
        %v712 = vrot.slane %v704, %v711
        %v714 = vunpack.c.l.s4 1934713408
        %v715 = vunpack.c.0.s8 %v714
        %v716 = vlaneseq
        %v717 = vshrl.u32 %v716, 7
        %v718 = vsub.s32 %v715, %v717
        %v719 = vrot.slane %v705, %v718
        %v720 = vcombine.high %v696, 0.0
        %v721 = vcombine.high %v703, 0.0
        %v722 = vcombine.high %v712, 0.0
        %v723 = vcombine.high %v719, 0.0
        %v724 = vcombine.low %v696, %v703
        %v726 = vunpack.c.l.s4 1983009808
        %v727 = vunpack.c.0.s8 %v726
        %v728 = vlaneseq
        %v729 = vshrl.u32 %v728, 7
        %v730 = vsub.s32 %v727, %v729
        %v731 = vrot.slane %v724, %v730
        %v732 = vcombine.low %v720, %v721
        %v734 = vunpack.c.l.s4 1983009808
        %v735 = vunpack.c.0.s8 %v734
        %v736 = vlaneseq
        %v737 = vshrl.u32 %v736, 7
        %v738 = vsub.s32 %v735, %v737
        %v739 = vrot.slane %v732, %v738
        %v740 = vcombine.low %v712, %v719
        %v742 = vunpack.c.l.s4 1983009808
        %v743 = vunpack.c.0.s8 %v742
        %v744 = vlaneseq
        %v745 = vshrl.u32 %v744, 7
        %v746 = vsub.s32 %v743, %v745
        %v747 = vrot.slane %v740, %v746
        %v748 = vcombine.low %v722, %v723
        %v750 = vunpack.c.l.s4 1983009808
        %v751 = vunpack.c.0.s8 %v750
        %v752 = vlaneseq
        %v753 = vshrl.u32 %v752, 7
        %v754 = vsub.s32 %v751, %v753
        %v755 = vrot.slane %v748, %v754
        %v756 = vcombine.low %v731, %v739
        %v757 = vcombine.high %v731, %v739
        %v759 = vunpack.c.l.s4 1934713408
        %v760 = vunpack.c.0.s8 %v759
        %v761 = vlaneseq
        %v762 = vshrl.u32 %v761, 7
        %v763 = vsub.s32 %v760, %v762
        %v764 = vrot.slane %v756, %v763
        %v766 = vunpack.c.l.s4 1934713408
        %v767 = vunpack.c.0.s8 %v766
        %v768 = vlaneseq
        %v769 = vshrl.u32 %v768, 7
        %v770 = vsub.s32 %v767, %v769
        %v771 = vrot.slane %v757, %v770
        %v772 = vcombine.low %v747, %v755
        %v773 = vcombine.high %v747, %v755
        %v775 = vunpack.c.l.s4 1934713408
        %v776 = vunpack.c.0.s8 %v775
        %v777 = vlaneseq
        %v778 = vshrl.u32 %v777, 7
        %v779 = vsub.s32 %v776, %v778
        %v780 = vrot.slane %v772, %v779
        %v782 = vunpack.c.l.s4 1934713408
        %v783 = vunpack.c.0.s8 %v782
        %v784 = vlaneseq
        %v785 = vshrl.u32 %v784, 7
        %v786 = vsub.s32 %v783, %v785
        %v787 = vrot.slane %v773, %v786
        %v788 = vcombine.low %v764, %v780
        %v789 = vcombine.high %v764, %v780
        %v790 = vcombine.low %v771, %v787
        %v791 = vcombine.high %v771, %v787
        %793 = vrot.lane.b32.xlu0 %v496, 112
        %v794 = vpop.permute.xlu0 %793
        %796 = vrot.lane.b32.xlu0 %v496, 96
        %v797 = vpop.permute.xlu0 %796
        %799 = vrot.lane.b32.xlu0 %v496, 80
        %v800 = vpop.permute.xlu0 %799
        %v802 = vcombine.low %v496, %v797
        %v803 = vcombine.high %v496, %v797
        %v805 = vunpack.c.l.s4 1983009808
        %v806 = vunpack.c.0.s8 %v805
        %v807 = vlaneseq
        %v808 = vshrl.u32 %v807, 7
        %v809 = vsub.s32 %v806, %v808
        %v810 = vrot.slane %v802, %v809
        %v812 = vunpack.c.l.s4 1983009808
        %v813 = vunpack.c.0.s8 %v812
        %v814 = vlaneseq
        %v815 = vshrl.u32 %v814, 7
        %v816 = vsub.s32 %v813, %v815
        %v817 = vrot.slane %v803, %v816
        %v818 = vcombine.low %v794, %v800
        %v819 = vcombine.high %v794, %v800
        %v821 = vunpack.c.l.s4 1983009808
        %v822 = vunpack.c.0.s8 %v821
        %v823 = vlaneseq
        %v824 = vshrl.u32 %v823, 7
        %v825 = vsub.s32 %v822, %v824
        %v826 = vrot.slane %v818, %v825
        %v828 = vunpack.c.l.s4 1983009808
        %v829 = vunpack.c.0.s8 %v828
        %v830 = vlaneseq
        %v831 = vshrl.u32 %v830, 7
        %v832 = vsub.s32 %v829, %v831
        %v833 = vrot.slane %v819, %v832
        %v834 = vcombine.low %v810, %v826
        %v835 = vcombine.high %v810, %v826
        %v837 = vunpack.c.l.s4 1934713408
        %v838 = vunpack.c.0.s8 %v837
        %v839 = vlaneseq
        %v840 = vshrl.u32 %v839, 7
        %v841 = vsub.s32 %v838, %v840
        %v842 = vrot.slane %v834, %v841
        %v844 = vunpack.c.l.s4 1934713408
        %v845 = vunpack.c.0.s8 %v844
        %v846 = vlaneseq
        %v847 = vshrl.u32 %v846, 7
        %v848 = vsub.s32 %v845, %v847
        %v849 = vrot.slane %v835, %v848
        %v850 = vcombine.low %v817, %v833
        %v851 = vcombine.high %v817, %v833
        %v853 = vunpack.c.l.s4 1934713408
        %v854 = vunpack.c.0.s8 %v853
        %v855 = vlaneseq
        %v856 = vshrl.u32 %v855, 7
        %v857 = vsub.s32 %v854, %v856
        %v858 = vrot.slane %v850, %v857
        %v860 = vunpack.c.l.s4 1934713408
        %v861 = vunpack.c.0.s8 %v860
        %v862 = vlaneseq
        %v863 = vshrl.u32 %v862, 7
        %v864 = vsub.s32 %v861, %v863
        %v865 = vrot.slane %v851, %v864
        %v866 = vcombine.high %v842, 0.0
        %v867 = vcombine.high %v849, 0.0
        %v868 = vcombine.high %v858, 0.0
        %v869 = vcombine.high %v865, 0.0
        %v870 = vcombine.low %v842, %v849
        %v872 = vunpack.c.l.s4 1983009808
        %v873 = vunpack.c.0.s8 %v872
        %v874 = vlaneseq
        %v875 = vshrl.u32 %v874, 7
        %v876 = vsub.s32 %v873, %v875
        %v877 = vrot.slane %v870, %v876
        %v878 = vcombine.low %v866, %v867
        %v880 = vunpack.c.l.s4 1983009808
        %v881 = vunpack.c.0.s8 %v880
        %v882 = vlaneseq
        %v883 = vshrl.u32 %v882, 7
        %v884 = vsub.s32 %v881, %v883
        %v885 = vrot.slane %v878, %v884
        %v886 = vcombine.low %v858, %v865
        %v888 = vunpack.c.l.s4 1983009808
        %v889 = vunpack.c.0.s8 %v888
        %v890 = vlaneseq
        %v891 = vshrl.u32 %v890, 7
        %v892 = vsub.s32 %v889, %v891
        %v893 = vrot.slane %v886, %v892
        %v894 = vcombine.low %v868, %v869
        %v896 = vunpack.c.l.s4 1983009808
        %v897 = vunpack.c.0.s8 %v896
        %v898 = vlaneseq
        %v899 = vshrl.u32 %v898, 7
        %v900 = vsub.s32 %v897, %v899
        %v901 = vrot.slane %v894, %v900
        %v902 = vcombine.low %v877, %v885
        %v903 = vcombine.high %v877, %v885
        %v905 = vunpack.c.l.s4 1934713408
        %v906 = vunpack.c.0.s8 %v905
        %v907 = vlaneseq
        %v908 = vshrl.u32 %v907, 7
        %v909 = vsub.s32 %v906, %v908
        %v910 = vrot.slane %v902, %v909
        %v912 = vunpack.c.l.s4 1934713408
        %v913 = vunpack.c.0.s8 %v912
        %v914 = vlaneseq
        %v915 = vshrl.u32 %v914, 7
        %v916 = vsub.s32 %v913, %v915
        %v917 = vrot.slane %v903, %v916
        %v918 = vcombine.low %v893, %v901
        %v919 = vcombine.high %v893, %v901
        %v921 = vunpack.c.l.s4 1934713408
        %v922 = vunpack.c.0.s8 %v921
        %v923 = vlaneseq
        %v924 = vshrl.u32 %v923, 7
        %v925 = vsub.s32 %v922, %v924
        %v926 = vrot.slane %v918, %v925
        %v928 = vunpack.c.l.s4 1934713408
        %v929 = vunpack.c.0.s8 %v928
        %v930 = vlaneseq
        %v931 = vshrl.u32 %v930, 7
        %v932 = vsub.s32 %v929, %v931
        %v933 = vrot.slane %v919, %v932
        %v934 = vcombine.low %v910, %v926
        %v935 = vcombine.high %v910, %v926
        %v936 = vcombine.low %v917, %v933
        %v937 = vcombine.high %v917, %v933
        %v938 = vmul.f32 %v640, 0.25
        %v939 = vmul.f32 %v641, 0.25
        %v940 = vmul.f32 %v642, 0.25
        %v941 = vmul.f32 %v643, 0.25
        %vm942 = vcmask 130048
        %v944 = vsel %vm942, %v938, 0
        %v947 = vsel %vm942, %v788, 0
        %949 = vmatprep.subr.mxu0 0.0
        %950 = vmatpush1.xpose.msra.mxu0 0.0
        %951 = vmatprep.subr.mxu0 0.0
        %952 = vmatpush1.xpose.msra.mxu0 0.0
        %953 = vmatprep.subr.mxu0 0.0
        %954 = vmatpush1.xpose.msra.mxu0 0.0
        %955 = vmatprep.subr.mxu0 0.0
        %956 = vmatpush1.xpose.msra.mxu0 0.0
        %957 = vmatprep.subr.mxu0 0.0
        %958 = vmatpush1.xpose.msra.mxu0 0.0
        %959 = vmatprep.subr.mxu0 0.0
        %960 = vmatpush1.xpose.msra.mxu0 0.0
        %961 = vmatprep.subr.mxu0 0.0
        %962 = vmatpush1.xpose.msra.mxu0 0.0
        %963 = vmatprep.subr.mxu0 0.0
        %964 = vmatpush1.xpose.msra.mxu0 0.0
        %965 = vmatprep.subr.mxu0 0.0
        %966 = vmatpush1.xpose.msra.mxu0 0.0
        %967 = vmatprep.subr.mxu0 0.0
        %968 = vmatpush1.xpose.msra.mxu0 0.0
        %969 = vmatprep.subr.mxu0 0.0
        %970 = vmatpush1.xpose.msra.mxu0 0.0
        %971 = vmatprep.subr.mxu0 0.0
        %972 = vmatpush1.xpose.msra.mxu0 0.0
        %973 = vmatprep.subr.mxu0 0.0
        %974 = vmatpush1.xpose.msra.mxu0 0.0
        %975 = vmatprep.subr.mxu0 0.0
        %976 = vmatpush1.xpose.msra.mxu0 0.0
        %977 = vmatprep.subr.mxu0 0.0
        %978 = vmatpush1.xpose.msra.mxu0 0.0
        %979 = vmatprep.subr.mxu0 0.0
        %980 = vmatpush1.xpose.msra.mxu0 %v947
        %981 = vmatprep.subr.mxu0 0.0
        %982 = vmatpush2.xpose.msra.mxu0 0.0
        %983 = vmatprep.subr.mxu0 0.0
        %984 = vmatpush2.xpose.msra.mxu0 0.0
        %985 = vmatprep.subr.mxu0 0.0
        %986 = vmatpush2.xpose.msra.mxu0 0.0
        %987 = vmatprep.subr.mxu0 0.0
        %988 = vmatpush2.xpose.msra.mxu0 0.0
        %989 = vmatprep.subr.mxu0 0.0
        %990 = vmatpush2.xpose.msra.mxu0 0.0
        %991 = vmatprep.subr.mxu0 0.0
        %992 = vmatpush2.xpose.msra.mxu0 0.0
        %993 = vmatprep.subr.mxu0 0.0
        %994 = vmatpush2.xpose.msra.mxu0 0.0
        %995 = vmatprep.subr.mxu0 0.0
        %996 = vmatpush2.xpose.msra.mxu0 0.0
        %997 = vmatprep.subr.mxu0 0.0
        %998 = vmatpush2.xpose.msra.mxu0 0.0
        %999 = vmatprep.subr.mxu0 0.0
        %1000 = vmatpush2.xpose.msra.mxu0 0.0
        %1001 = vmatprep.subr.mxu0 0.0
        %1002 = vmatpush2.xpose.msra.mxu0 0.0
        %1003 = vmatprep.subr.mxu0 0.0
        %1004 = vmatpush2.xpose.msra.mxu0 0.0
        %1005 = vmatprep.subr.mxu0 0.0
        %1006 = vmatpush2.xpose.msra.mxu0 0.0
        %1007 = vmatprep.subr.mxu0 0.0
        %1008 = vmatpush2.xpose.msra.mxu0 0.0
        %1009 = vmatprep.subr.mxu0 0.0
        %1010 = vmatpush2.xpose.msra.mxu0 0.0
        %1011 = vmatprep.subr.mxu0 0.0
        %1012 = vmatpush2.xpose.msra.mxu0 0.0
        %1013 = vmatprep.mubr.f32.mxu0 0.0
        %1014 = vmatmul.mubr.f32.gmra.mxu0 %v944
        %v1015 = vpop.f32.mrf.mxu0
        %v1016 = vadd.f32 0.0, %v1015
        %v1017 = vpop.f32.mrf.mxu0
        %1018 = vdwg.mxu0
        %v1020 = vsel %vm942, %v939, 0
        %v1023 = vsel %vm942, %v789, 0
        %1025 = vmatprep.subr.mxu0 0.0
        %1026 = vmatpush1.xpose.msra.mxu0 0.0
        %1027 = vmatprep.subr.mxu0 0.0
        %1028 = vmatpush1.xpose.msra.mxu0 0.0
        %1029 = vmatprep.subr.mxu0 0.0
        %1030 = vmatpush1.xpose.msra.mxu0 0.0
        %1031 = vmatprep.subr.mxu0 0.0
        %1032 = vmatpush1.xpose.msra.mxu0 0.0
        %1033 = vmatprep.subr.mxu0 0.0
        %1034 = vmatpush1.xpose.msra.mxu0 0.0
        %1035 = vmatprep.subr.mxu0 0.0
        %1036 = vmatpush1.xpose.msra.mxu0 0.0
        %1037 = vmatprep.subr.mxu0 0.0
        %1038 = vmatpush1.xpose.msra.mxu0 0.0
        %1039 = vmatprep.subr.mxu0 0.0
        %1040 = vmatpush1.xpose.msra.mxu0 0.0
        %1041 = vmatprep.subr.mxu0 0.0
        %1042 = vmatpush1.xpose.msra.mxu0 0.0
        %1043 = vmatprep.subr.mxu0 0.0
        %1044 = vmatpush1.xpose.msra.mxu0 0.0
        %1045 = vmatprep.subr.mxu0 0.0
        %1046 = vmatpush1.xpose.msra.mxu0 0.0
        %1047 = vmatprep.subr.mxu0 0.0
        %1048 = vmatpush1.xpose.msra.mxu0 0.0
        %1049 = vmatprep.subr.mxu0 0.0
        %1050 = vmatpush1.xpose.msra.mxu0 0.0
        %1051 = vmatprep.subr.mxu0 0.0
        %1052 = vmatpush1.xpose.msra.mxu0 0.0
        %1053 = vmatprep.subr.mxu0 0.0
        %1054 = vmatpush1.xpose.msra.mxu0 0.0
        %1055 = vmatprep.subr.mxu0 0.0
        %1056 = vmatpush1.xpose.msra.mxu0 %v1023
        %1057 = vmatprep.subr.mxu0 0.0
        %1058 = vmatpush2.xpose.msra.mxu0 0.0
        %1059 = vmatprep.subr.mxu0 0.0
        %1060 = vmatpush2.xpose.msra.mxu0 0.0
        %1061 = vmatprep.subr.mxu0 0.0
        %1062 = vmatpush2.xpose.msra.mxu0 0.0
        %1063 = vmatprep.subr.mxu0 0.0
        %1064 = vmatpush2.xpose.msra.mxu0 0.0
        %1065 = vmatprep.subr.mxu0 0.0
        %1066 = vmatpush2.xpose.msra.mxu0 0.0
        %1067 = vmatprep.subr.mxu0 0.0
        %1068 = vmatpush2.xpose.msra.mxu0 0.0
        %1069 = vmatprep.subr.mxu0 0.0
        %1070 = vmatpush2.xpose.msra.mxu0 0.0
        %1071 = vmatprep.subr.mxu0 0.0
        %1072 = vmatpush2.xpose.msra.mxu0 0.0
        %1073 = vmatprep.subr.mxu0 0.0
        %1074 = vmatpush2.xpose.msra.mxu0 0.0
        %1075 = vmatprep.subr.mxu0 0.0
        %1076 = vmatpush2.xpose.msra.mxu0 0.0
        %1077 = vmatprep.subr.mxu0 0.0
        %1078 = vmatpush2.xpose.msra.mxu0 0.0
        %1079 = vmatprep.subr.mxu0 0.0
        %1080 = vmatpush2.xpose.msra.mxu0 0.0
        %1081 = vmatprep.subr.mxu0 0.0
        %1082 = vmatpush2.xpose.msra.mxu0 0.0
        %1083 = vmatprep.subr.mxu0 0.0
        %1084 = vmatpush2.xpose.msra.mxu0 0.0
        %1085 = vmatprep.subr.mxu0 0.0
        %1086 = vmatpush2.xpose.msra.mxu0 0.0
        %1087 = vmatprep.subr.mxu0 0.0
        %1088 = vmatpush2.xpose.msra.mxu0 0.0
        %1089 = vmatprep.mubr.f32.mxu0 0.0
        %1090 = vmatmul.mubr.f32.gmra.mxu0 %v1020
        %v1091 = vpop.f32.mrf.mxu0
        %v1092 = vadd.f32 0.0, %v1091
        %v1093 = vpop.f32.mrf.mxu0
        %1094 = vdwg.mxu0
        %v1096 = vsel %vm942, %v940, 0
        %v1099 = vsel %vm942, %v790, 0
        %1101 = vmatprep.subr.mxu0 0.0
        %1102 = vmatpush1.xpose.msra.mxu0 0.0
        %1103 = vmatprep.subr.mxu0 0.0
        %1104 = vmatpush1.xpose.msra.mxu0 0.0
        %1105 = vmatprep.subr.mxu0 0.0
        %1106 = vmatpush1.xpose.msra.mxu0 0.0
        %1107 = vmatprep.subr.mxu0 0.0
        %1108 = vmatpush1.xpose.msra.mxu0 0.0
        %1109 = vmatprep.subr.mxu0 0.0
        %1110 = vmatpush1.xpose.msra.mxu0 0.0
        %1111 = vmatprep.subr.mxu0 0.0
        %1112 = vmatpush1.xpose.msra.mxu0 0.0
        %1113 = vmatprep.subr.mxu0 0.0
        %1114 = vmatpush1.xpose.msra.mxu0 0.0
        %1115 = vmatprep.subr.mxu0 0.0
        %1116 = vmatpush1.xpose.msra.mxu0 0.0
        %1117 = vmatprep.subr.mxu0 0.0
        %1118 = vmatpush1.xpose.msra.mxu0 0.0
        %1119 = vmatprep.subr.mxu0 0.0
        %1120 = vmatpush1.xpose.msra.mxu0 0.0
        %1121 = vmatprep.subr.mxu0 0.0
        %1122 = vmatpush1.xpose.msra.mxu0 0.0
        %1123 = vmatprep.subr.mxu0 0.0
        %1124 = vmatpush1.xpose.msra.mxu0 0.0
        %1125 = vmatprep.subr.mxu0 0.0
        %1126 = vmatpush1.xpose.msra.mxu0 0.0
        %1127 = vmatprep.subr.mxu0 0.0
        %1128 = vmatpush1.xpose.msra.mxu0 0.0
        %1129 = vmatprep.subr.mxu0 0.0
        %1130 = vmatpush1.xpose.msra.mxu0 0.0
        %1131 = vmatprep.subr.mxu0 0.0
        %1132 = vmatpush1.xpose.msra.mxu0 %v1099
        %1133 = vmatprep.subr.mxu0 0.0
        %1134 = vmatpush2.xpose.msra.mxu0 0.0
        %1135 = vmatprep.subr.mxu0 0.0
        %1136 = vmatpush2.xpose.msra.mxu0 0.0
        %1137 = vmatprep.subr.mxu0 0.0
        %1138 = vmatpush2.xpose.msra.mxu0 0.0
        %1139 = vmatprep.subr.mxu0 0.0
        %1140 = vmatpush2.xpose.msra.mxu0 0.0
        %1141 = vmatprep.subr.mxu0 0.0
        %1142 = vmatpush2.xpose.msra.mxu0 0.0
        %1143 = vmatprep.subr.mxu0 0.0
        %1144 = vmatpush2.xpose.msra.mxu0 0.0
        %1145 = vmatprep.subr.mxu0 0.0
        %1146 = vmatpush2.xpose.msra.mxu0 0.0
        %1147 = vmatprep.subr.mxu0 0.0
        %1148 = vmatpush2.xpose.msra.mxu0 0.0
        %1149 = vmatprep.subr.mxu0 0.0
        %1150 = vmatpush2.xpose.msra.mxu0 0.0
        %1151 = vmatprep.subr.mxu0 0.0
        %1152 = vmatpush2.xpose.msra.mxu0 0.0
        %1153 = vmatprep.subr.mxu0 0.0
        %1154 = vmatpush2.xpose.msra.mxu0 0.0
        %1155 = vmatprep.subr.mxu0 0.0
        %1156 = vmatpush2.xpose.msra.mxu0 0.0
        %1157 = vmatprep.subr.mxu0 0.0
        %1158 = vmatpush2.xpose.msra.mxu0 0.0
        %1159 = vmatprep.subr.mxu0 0.0
        %1160 = vmatpush2.xpose.msra.mxu0 0.0
        %1161 = vmatprep.subr.mxu0 0.0
        %1162 = vmatpush2.xpose.msra.mxu0 0.0
        %1163 = vmatprep.subr.mxu0 0.0
        %1164 = vmatpush2.xpose.msra.mxu0 0.0
        %1165 = vmatprep.mubr.f32.mxu0 0.0
        %1166 = vmatmul.mubr.f32.gmra.mxu0 %v1096
        %v1167 = vpop.f32.mrf.mxu0
        %v1168 = vadd.f32 0.0, %v1167
        %v1169 = vpop.f32.mrf.mxu0
        %1170 = vdwg.mxu0
        %v1172 = vsel %vm942, %v941, 0
        %v1175 = vsel %vm942, %v791, 0
        %1177 = vmatprep.subr.mxu0 0.0
        %1178 = vmatpush1.xpose.msra.mxu0 0.0
        %1179 = vmatprep.subr.mxu0 0.0
        %1180 = vmatpush1.xpose.msra.mxu0 0.0
        %1181 = vmatprep.subr.mxu0 0.0
        %1182 = vmatpush1.xpose.msra.mxu0 0.0
        %1183 = vmatprep.subr.mxu0 0.0
        %1184 = vmatpush1.xpose.msra.mxu0 0.0
        %1185 = vmatprep.subr.mxu0 0.0
        %1186 = vmatpush1.xpose.msra.mxu0 0.0
        %1187 = vmatprep.subr.mxu0 0.0
        %1188 = vmatpush1.xpose.msra.mxu0 0.0
        %1189 = vmatprep.subr.mxu0 0.0
        %1190 = vmatpush1.xpose.msra.mxu0 0.0
        %1191 = vmatprep.subr.mxu0 0.0
        %1192 = vmatpush1.xpose.msra.mxu0 0.0
        %1193 = vmatprep.subr.mxu0 0.0
        %1194 = vmatpush1.xpose.msra.mxu0 0.0
        %1195 = vmatprep.subr.mxu0 0.0
        %1196 = vmatpush1.xpose.msra.mxu0 0.0
        %1197 = vmatprep.subr.mxu0 0.0
        %1198 = vmatpush1.xpose.msra.mxu0 0.0
        %1199 = vmatprep.subr.mxu0 0.0
        %1200 = vmatpush1.xpose.msra.mxu0 0.0
        %1201 = vmatprep.subr.mxu0 0.0
        %1202 = vmatpush1.xpose.msra.mxu0 0.0
        %1203 = vmatprep.subr.mxu0 0.0
        %1204 = vmatpush1.xpose.msra.mxu0 0.0
        %1205 = vmatprep.subr.mxu0 0.0
        %1206 = vmatpush1.xpose.msra.mxu0 0.0
        %1207 = vmatprep.subr.mxu0 0.0
        %1208 = vmatpush1.xpose.msra.mxu0 %v1175
        %1209 = vmatprep.subr.mxu0 0.0
        %1210 = vmatpush2.xpose.msra.mxu0 0.0
        %1211 = vmatprep.subr.mxu0 0.0
        %1212 = vmatpush2.xpose.msra.mxu0 0.0
        %1213 = vmatprep.subr.mxu0 0.0
        %1214 = vmatpush2.xpose.msra.mxu0 0.0
        %1215 = vmatprep.subr.mxu0 0.0
        %1216 = vmatpush2.xpose.msra.mxu0 0.0
        %1217 = vmatprep.subr.mxu0 0.0
        %1218 = vmatpush2.xpose.msra.mxu0 0.0
        %1219 = vmatprep.subr.mxu0 0.0
        %1220 = vmatpush2.xpose.msra.mxu0 0.0
        %1221 = vmatprep.subr.mxu0 0.0
        %1222 = vmatpush2.xpose.msra.mxu0 0.0
        %1223 = vmatprep.subr.mxu0 0.0
        %1224 = vmatpush2.xpose.msra.mxu0 0.0
        %1225 = vmatprep.subr.mxu0 0.0
        %1226 = vmatpush2.xpose.msra.mxu0 0.0
        %1227 = vmatprep.subr.mxu0 0.0
        %1228 = vmatpush2.xpose.msra.mxu0 0.0
        %1229 = vmatprep.subr.mxu0 0.0
        %1230 = vmatpush2.xpose.msra.mxu0 0.0
        %1231 = vmatprep.subr.mxu0 0.0
        %1232 = vmatpush2.xpose.msra.mxu0 0.0
        %1233 = vmatprep.subr.mxu0 0.0
        %1234 = vmatpush2.xpose.msra.mxu0 0.0
        %1235 = vmatprep.subr.mxu0 0.0
        %1236 = vmatpush2.xpose.msra.mxu0 0.0
        %1237 = vmatprep.subr.mxu0 0.0
        %1238 = vmatpush2.xpose.msra.mxu0 0.0
        %1239 = vmatprep.subr.mxu0 0.0
        %1240 = vmatpush2.xpose.msra.mxu0 0.0
        %1241 = vmatprep.mubr.f32.mxu0 0.0
        %1242 = vmatmul.mubr.f32.gmra.mxu0 %v1172
        %v1243 = vpop.f32.mrf.mxu0
        %v1244 = vadd.f32 0.0, %v1243
        %v1245 = vpop.f32.mrf.mxu0
        %1246 = vdwg.mxu0
        %vm1247 = vcmask 64512
        %v1248 = vsel %vm1247, %v1016, -inf
        %1249 = vmax.xlane.f32.xlu0 %v1248
        %v1250 = vpop.xlane.xlu0 %1249
        %v1251 = vsel %vm1247, %v1092, -inf
        %1252 = vmax.xlane.f32.xlu0 %v1251
        %v1253 = vpop.xlane.xlu0 %1252
        %v1254 = vsel %vm1247, %v1168, -inf
        %1255 = vmax.xlane.f32.xlu0 %v1254
        %v1256 = vpop.xlane.xlu0 %1255
        %v1257 = vsel %vm1247, %v1244, -inf
        %1258 = vmax.xlane.f32.xlu0 %v1257
        %v1259 = vpop.xlane.xlu0 %1258
        %v1260 = vsub.f32 %v1016, %v1250
        %v1261 = vsub.f32 %v1092, %v1253
        %v1262 = vsub.f32 %v1168, %v1256
        %v1263 = vsub.f32 %v1244, %v1259
        %v1264 = vmul.f32 %v1260, 1.442695
        %v1265 = vpow.pop %v1264
        %v1266 = vmul.f32 %v1261, 1.442695
        %v1267 = vpow.pop %v1266
        %v1268 = vmul.f32 %v1262, 1.442695
        %v1269 = vpow.pop %v1268
        %v1270 = vmul.f32 %v1263, 1.442695
        %v1271 = vpow.pop %v1270
        %v1272 = vsel %vm1247, %v1265, 0.0
        %1273 = vadd.xlane.f32.xlu0 %v1272
        %v1274 = vpop.xlane.xlu0 %1273
        %v1275 = vsel %vm1247, %v1267, 0.0
        %1276 = vadd.xlane.f32.xlu0 %v1275
        %v1277 = vpop.xlane.xlu0 %1276
        %v1278 = vsel %vm1247, %v1269, 0.0
        %1279 = vadd.xlane.f32.xlu0 %v1278
        %v1280 = vpop.xlane.xlu0 %1279
        %v1281 = vsel %vm1247, %v1271, 0.0
        %1282 = vadd.xlane.f32.xlu0 %v1281
        %v1283 = vpop.xlane.xlu0 %1282
        %v1284 = vrcp.pop %v1274
        %v1285 = vrcp.pop %v1277
        %v1286 = vrcp.pop %v1280
        %v1287 = vrcp.pop %v1283
        %v1288 = vmul.f32 %v1265, %v1284
        %v1289 = vmul.f32 %v1267, %v1285
        %v1290 = vmul.f32 %v1269, %v1286
        %v1291 = vmul.f32 %v1271, %v1287
        %v1293 = vsel %vm1247, %v1288, 0
        %1295 = vmatprep.subr.mxu0 0.0
        %1296 = vmatpush1.msra.mxu0 0.0
        %1297 = vmatprep.subr.mxu0 0.0
        %1298 = vmatpush1.msra.mxu0 0.0
        %1299 = vmatprep.subr.mxu0 0.0
        %1300 = vmatpush1.msra.mxu0 0.0
        %1301 = vmatprep.subr.mxu0 0.0
        %1302 = vmatpush1.msra.mxu0 0.0
        %1303 = vmatprep.subr.mxu0 0.0
        %1304 = vmatpush1.msra.mxu0 0.0
        %1305 = vmatprep.subr.mxu0 0.0
        %1306 = vmatpush1.msra.mxu0 0.0
        %1307 = vmatprep.subr.mxu0 0.0
        %1308 = vmatpush1.msra.mxu0 0.0
        %1309 = vmatprep.subr.mxu0 0.0
        %1310 = vmatpush1.msra.mxu0 0.0
        %1311 = vmatprep.subr.mxu0 0.0
        %1312 = vmatpush1.msra.mxu0 0.0
        %1313 = vmatprep.subr.mxu0 0.0
        %1314 = vmatpush1.msra.mxu0 0.0
        %1315 = vmatprep.subr.mxu0 0.0
        %1316 = vmatpush1.msra.mxu0 0.0
        %1317 = vmatprep.subr.mxu0 0.0
        %1318 = vmatpush1.msra.mxu0 0.0
        %1319 = vmatprep.subr.mxu0 0.0
        %1320 = vmatpush1.msra.mxu0 0.0
        %1321 = vmatprep.subr.mxu0 0.0
        %1322 = vmatpush1.msra.mxu0 0.0
        %1323 = vmatprep.subr.mxu0 0.0
        %1324 = vmatpush1.msra.mxu0 0.0
        %1325 = vmatprep.subr.mxu0 0.0
        %1326 = vmatpush1.msra.mxu0 %v934
        %1327 = vmatprep.subr.mxu0 0.0
        %1328 = vmatpush2.msra.mxu0 0.0
        %1329 = vmatprep.subr.mxu0 0.0
        %1330 = vmatpush2.msra.mxu0 0.0
        %1331 = vmatprep.subr.mxu0 0.0
        %1332 = vmatpush2.msra.mxu0 0.0
        %1333 = vmatprep.subr.mxu0 0.0
        %1334 = vmatpush2.msra.mxu0 0.0
        %1335 = vmatprep.subr.mxu0 0.0
        %1336 = vmatpush2.msra.mxu0 0.0
        %1337 = vmatprep.subr.mxu0 0.0
        %1338 = vmatpush2.msra.mxu0 0.0
        %1339 = vmatprep.subr.mxu0 0.0
        %1340 = vmatpush2.msra.mxu0 0.0
        %1341 = vmatprep.subr.mxu0 0.0
        %1342 = vmatpush2.msra.mxu0 0.0
        %1343 = vmatprep.subr.mxu0 0.0
        %1344 = vmatpush2.msra.mxu0 0.0
        %1345 = vmatprep.subr.mxu0 0.0
        %1346 = vmatpush2.msra.mxu0 0.0
        %1347 = vmatprep.subr.mxu0 0.0
        %1348 = vmatpush2.msra.mxu0 0.0
        %1349 = vmatprep.subr.mxu0 0.0
        %1350 = vmatpush2.msra.mxu0 0.0
        %1351 = vmatprep.subr.mxu0 0.0
        %1352 = vmatpush2.msra.mxu0 0.0
        %1353 = vmatprep.subr.mxu0 0.0
        %1354 = vmatpush2.msra.mxu0 0.0
        %1355 = vmatprep.subr.mxu0 0.0
        %1356 = vmatpush2.msra.mxu0 0.0
        %1357 = vmatprep.subr.mxu0 0.0
        %1358 = vmatpush2.msra.mxu0 0.0
        %1359 = vmatprep.mubr.f32.mxu0 0.0
        %1360 = vmatmul.mubr.f32.gmra.mxu0 %v1293
        %v1361 = vpop.f32.mrf.mxu0
        %v1362 = vadd.f32 0.0, %v1361
        %v1363 = vpop.f32.mrf.mxu0
        %1364 = vdwg.mxu0
        %v1366 = vsel %vm1247, %v1289, 0
        %1368 = vmatprep.subr.mxu0 0.0
        %1369 = vmatpush1.msra.mxu0 0.0
        %1370 = vmatprep.subr.mxu0 0.0
        %1371 = vmatpush1.msra.mxu0 0.0
        %1372 = vmatprep.subr.mxu0 0.0
        %1373 = vmatpush1.msra.mxu0 0.0
        %1374 = vmatprep.subr.mxu0 0.0
        %1375 = vmatpush1.msra.mxu0 0.0
        %1376 = vmatprep.subr.mxu0 0.0
        %1377 = vmatpush1.msra.mxu0 0.0
        %1378 = vmatprep.subr.mxu0 0.0
        %1379 = vmatpush1.msra.mxu0 0.0
        %1380 = vmatprep.subr.mxu0 0.0
        %1381 = vmatpush1.msra.mxu0 0.0
        %1382 = vmatprep.subr.mxu0 0.0
        %1383 = vmatpush1.msra.mxu0 0.0
        %1384 = vmatprep.subr.mxu0 0.0
        %1385 = vmatpush1.msra.mxu0 0.0
        %1386 = vmatprep.subr.mxu0 0.0
        %1387 = vmatpush1.msra.mxu0 0.0
        %1388 = vmatprep.subr.mxu0 0.0
        %1389 = vmatpush1.msra.mxu0 0.0
        %1390 = vmatprep.subr.mxu0 0.0
        %1391 = vmatpush1.msra.mxu0 0.0
        %1392 = vmatprep.subr.mxu0 0.0
        %1393 = vmatpush1.msra.mxu0 0.0
        %1394 = vmatprep.subr.mxu0 0.0
        %1395 = vmatpush1.msra.mxu0 0.0
        %1396 = vmatprep.subr.mxu0 0.0
        %1397 = vmatpush1.msra.mxu0 0.0
        %1398 = vmatprep.subr.mxu0 0.0
        %1399 = vmatpush1.msra.mxu0 %v935
        %1400 = vmatprep.subr.mxu0 0.0
        %1401 = vmatpush2.msra.mxu0 0.0
        %1402 = vmatprep.subr.mxu0 0.0
        %1403 = vmatpush2.msra.mxu0 0.0
        %1404 = vmatprep.subr.mxu0 0.0
        %1405 = vmatpush2.msra.mxu0 0.0
        %1406 = vmatprep.subr.mxu0 0.0
        %1407 = vmatpush2.msra.mxu0 0.0
        %1408 = vmatprep.subr.mxu0 0.0
        %1409 = vmatpush2.msra.mxu0 0.0
        %1410 = vmatprep.subr.mxu0 0.0
        %1411 = vmatpush2.msra.mxu0 0.0
        %1412 = vmatprep.subr.mxu0 0.0
        %1413 = vmatpush2.msra.mxu0 0.0
        %1414 = vmatprep.subr.mxu0 0.0
        %1415 = vmatpush2.msra.mxu0 0.0
        %1416 = vmatprep.subr.mxu0 0.0
        %1417 = vmatpush2.msra.mxu0 0.0
        %1418 = vmatprep.subr.mxu0 0.0
        %1419 = vmatpush2.msra.mxu0 0.0
        %1420 = vmatprep.subr.mxu0 0.0
        %1421 = vmatpush2.msra.mxu0 0.0
        %1422 = vmatprep.subr.mxu0 0.0
        %1423 = vmatpush2.msra.mxu0 0.0
        %1424 = vmatprep.subr.mxu0 0.0
        %1425 = vmatpush2.msra.mxu0 0.0
        %1426 = vmatprep.subr.mxu0 0.0
        %1427 = vmatpush2.msra.mxu0 0.0
        %1428 = vmatprep.subr.mxu0 0.0
        %1429 = vmatpush2.msra.mxu0 0.0
        %1430 = vmatprep.subr.mxu0 0.0
        %1431 = vmatpush2.msra.mxu0 0.0
        %1432 = vmatprep.mubr.f32.mxu0 0.0
        %1433 = vmatmul.mubr.f32.gmra.mxu0 %v1366
        %v1434 = vpop.f32.mrf.mxu0
        %v1435 = vadd.f32 0.0, %v1434
        %v1436 = vpop.f32.mrf.mxu0
        %1437 = vdwg.mxu0
        %v1439 = vsel %vm1247, %v1290, 0
        %1441 = vmatprep.subr.mxu0 0.0
        %1442 = vmatpush1.msra.mxu0 0.0
        %1443 = vmatprep.subr.mxu0 0.0
        %1444 = vmatpush1.msra.mxu0 0.0
        %1445 = vmatprep.subr.mxu0 0.0
        %1446 = vmatpush1.msra.mxu0 0.0
        %1447 = vmatprep.subr.mxu0 0.0
        %1448 = vmatpush1.msra.mxu0 0.0
        %1449 = vmatprep.subr.mxu0 0.0
        %1450 = vmatpush1.msra.mxu0 0.0
        %1451 = vmatprep.subr.mxu0 0.0
        %1452 = vmatpush1.msra.mxu0 0.0
        %1453 = vmatprep.subr.mxu0 0.0
        %1454 = vmatpush1.msra.mxu0 0.0
        %1455 = vmatprep.subr.mxu0 0.0
        %1456 = vmatpush1.msra.mxu0 0.0
        %1457 = vmatprep.subr.mxu0 0.0
        %1458 = vmatpush1.msra.mxu0 0.0
        %1459 = vmatprep.subr.mxu0 0.0
        %1460 = vmatpush1.msra.mxu0 0.0
        %1461 = vmatprep.subr.mxu0 0.0
        %1462 = vmatpush1.msra.mxu0 0.0
        %1463 = vmatprep.subr.mxu0 0.0
        %1464 = vmatpush1.msra.mxu0 0.0
        %1465 = vmatprep.subr.mxu0 0.0
        %1466 = vmatpush1.msra.mxu0 0.0
        %1467 = vmatprep.subr.mxu0 0.0
        %1468 = vmatpush1.msra.mxu0 0.0
        %1469 = vmatprep.subr.mxu0 0.0
        %1470 = vmatpush1.msra.mxu0 0.0
        %1471 = vmatprep.subr.mxu0 0.0
        %1472 = vmatpush1.msra.mxu0 %v936
        %1473 = vmatprep.subr.mxu0 0.0
        %1474 = vmatpush2.msra.mxu0 0.0
        %1475 = vmatprep.subr.mxu0 0.0
        %1476 = vmatpush2.msra.mxu0 0.0
        %1477 = vmatprep.subr.mxu0 0.0
        %1478 = vmatpush2.msra.mxu0 0.0
        %1479 = vmatprep.subr.mxu0 0.0
        %1480 = vmatpush2.msra.mxu0 0.0
        %1481 = vmatprep.subr.mxu0 0.0
        %1482 = vmatpush2.msra.mxu0 0.0
        %1483 = vmatprep.subr.mxu0 0.0
        %1484 = vmatpush2.msra.mxu0 0.0
        %1485 = vmatprep.subr.mxu0 0.0
        %1486 = vmatpush2.msra.mxu0 0.0
        %1487 = vmatprep.subr.mxu0 0.0
        %1488 = vmatpush2.msra.mxu0 0.0
        %1489 = vmatprep.subr.mxu0 0.0
        %1490 = vmatpush2.msra.mxu0 0.0
        %1491 = vmatprep.subr.mxu0 0.0
        %1492 = vmatpush2.msra.mxu0 0.0
        %1493 = vmatprep.subr.mxu0 0.0
        %1494 = vmatpush2.msra.mxu0 0.0
        %1495 = vmatprep.subr.mxu0 0.0
        %1496 = vmatpush2.msra.mxu0 0.0
        %1497 = vmatprep.subr.mxu0 0.0
        %1498 = vmatpush2.msra.mxu0 0.0
        %1499 = vmatprep.subr.mxu0 0.0
        %1500 = vmatpush2.msra.mxu0 0.0
        %1501 = vmatprep.subr.mxu0 0.0
        %1502 = vmatpush2.msra.mxu0 0.0
        %1503 = vmatprep.subr.mxu0 0.0
        %1504 = vmatpush2.msra.mxu0 0.0
        %1505 = vmatprep.mubr.f32.mxu0 0.0
        %1506 = vmatmul.mubr.f32.gmra.mxu0 %v1439
        %v1507 = vpop.f32.mrf.mxu0
        %v1508 = vadd.f32 0.0, %v1507
        %v1509 = vpop.f32.mrf.mxu0
        %1510 = vdwg.mxu0
        %v1512 = vsel %vm1247, %v1291, 0
        %1514 = vmatprep.subr.mxu0 0.0
        %1515 = vmatpush1.msra.mxu0 0.0
        %1516 = vmatprep.subr.mxu0 0.0
        %1517 = vmatpush1.msra.mxu0 0.0
        %1518 = vmatprep.subr.mxu0 0.0
        %1519 = vmatpush1.msra.mxu0 0.0
        %1520 = vmatprep.subr.mxu0 0.0
        %1521 = vmatpush1.msra.mxu0 0.0
        %1522 = vmatprep.subr.mxu0 0.0
        %1523 = vmatpush1.msra.mxu0 0.0
        %1524 = vmatprep.subr.mxu0 0.0
        %1525 = vmatpush1.msra.mxu0 0.0
        %1526 = vmatprep.subr.mxu0 0.0
        %1527 = vmatpush1.msra.mxu0 0.0
        %1528 = vmatprep.subr.mxu0 0.0
        %1529 = vmatpush1.msra.mxu0 0.0
        %1530 = vmatprep.subr.mxu0 0.0
        %1531 = vmatpush1.msra.mxu0 0.0
        %1532 = vmatprep.subr.mxu0 0.0
        %1533 = vmatpush1.msra.mxu0 0.0
        %1534 = vmatprep.subr.mxu0 0.0
        %1535 = vmatpush1.msra.mxu0 0.0
        %1536 = vmatprep.subr.mxu0 0.0
        %1537 = vmatpush1.msra.mxu0 0.0
        %1538 = vmatprep.subr.mxu0 0.0
        %1539 = vmatpush1.msra.mxu0 0.0
        %1540 = vmatprep.subr.mxu0 0.0
        %1541 = vmatpush1.msra.mxu0 0.0
        %1542 = vmatprep.subr.mxu0 0.0
        %1543 = vmatpush1.msra.mxu0 0.0
        %1544 = vmatprep.subr.mxu0 0.0
        %1545 = vmatpush1.msra.mxu0 %v937
        %1546 = vmatprep.subr.mxu0 0.0
        %1547 = vmatpush2.msra.mxu0 0.0
        %1548 = vmatprep.subr.mxu0 0.0
        %1549 = vmatpush2.msra.mxu0 0.0
        %1550 = vmatprep.subr.mxu0 0.0
        %1551 = vmatpush2.msra.mxu0 0.0
        %1552 = vmatprep.subr.mxu0 0.0
        %1553 = vmatpush2.msra.mxu0 0.0
        %1554 = vmatprep.subr.mxu0 0.0
        %1555 = vmatpush2.msra.mxu0 0.0
        %1556 = vmatprep.subr.mxu0 0.0
        %1557 = vmatpush2.msra.mxu0 0.0
        %1558 = vmatprep.subr.mxu0 0.0
        %1559 = vmatpush2.msra.mxu0 0.0
        %1560 = vmatprep.subr.mxu0 0.0
        %1561 = vmatpush2.msra.mxu0 0.0
        %1562 = vmatprep.subr.mxu0 0.0
        %1563 = vmatpush2.msra.mxu0 0.0
        %1564 = vmatprep.subr.mxu0 0.0
        %1565 = vmatpush2.msra.mxu0 0.0
        %1566 = vmatprep.subr.mxu0 0.0
        %1567 = vmatpush2.msra.mxu0 0.0
        %1568 = vmatprep.subr.mxu0 0.0
        %1569 = vmatpush2.msra.mxu0 0.0
        %1570 = vmatprep.subr.mxu0 0.0
        %1571 = vmatpush2.msra.mxu0 0.0
        %1572 = vmatprep.subr.mxu0 0.0
        %1573 = vmatpush2.msra.mxu0 0.0
        %1574 = vmatprep.subr.mxu0 0.0
        %1575 = vmatpush2.msra.mxu0 0.0
        %1576 = vmatprep.subr.mxu0 0.0
        %1577 = vmatpush2.msra.mxu0 0.0
        %1578 = vmatprep.mubr.f32.mxu0 0.0
        %1579 = vmatmul.mubr.f32.gmra.mxu0 %v1512
        %v1580 = vpop.f32.mrf.mxu0
        %v1581 = vadd.f32 0.0, %v1580
        %v1582 = vpop.f32.mrf.mxu0
        %1583 = vdwg.mxu0
        %v1584 = vcombine.low %v1362, %v1508
        %v1585 = vcombine.high %v1362, %v1508
        %v1587 = vunpack.c.l.s4 1983009808
        %v1588 = vunpack.c.0.s8 %v1587
        %v1589 = vlaneseq
        %v1590 = vshrl.u32 %v1589, 7
        %v1591 = vsub.s32 %v1588, %v1590
        %v1592 = vrot.slane %v1584, %v1591
        %v1594 = vunpack.c.l.s4 1983009808
        %v1595 = vunpack.c.0.s8 %v1594
        %v1596 = vlaneseq
        %v1597 = vshrl.u32 %v1596, 7
        %v1598 = vsub.s32 %v1595, %v1597
        %v1599 = vrot.slane %v1585, %v1598
        %v1600 = vcombine.low %v1435, %v1581
        %v1601 = vcombine.high %v1435, %v1581
        %v1603 = vunpack.c.l.s4 1983009808
        %v1604 = vunpack.c.0.s8 %v1603
        %v1605 = vlaneseq
        %v1606 = vshrl.u32 %v1605, 7
        %v1607 = vsub.s32 %v1604, %v1606
        %v1608 = vrot.slane %v1600, %v1607
        %v1610 = vunpack.c.l.s4 1983009808
        %v1611 = vunpack.c.0.s8 %v1610
        %v1612 = vlaneseq
        %v1613 = vshrl.u32 %v1612, 7
        %v1614 = vsub.s32 %v1611, %v1613
        %v1615 = vrot.slane %v1601, %v1614
        %v1616 = vcombine.low %v1592, %v1608
        %v1617 = vcombine.high %v1592, %v1608
        %v1619 = vunpack.c.l.s4 1934713408
        %v1620 = vunpack.c.0.s8 %v1619
        %v1621 = vlaneseq
        %v1622 = vshrl.u32 %v1621, 7
        %v1623 = vsub.s32 %v1620, %v1622
        %v1624 = vrot.slane %v1616, %v1623
        %v1626 = vunpack.c.l.s4 1934713408
        %v1627 = vunpack.c.0.s8 %v1626
        %v1628 = vlaneseq
        %v1629 = vshrl.u32 %v1628, 7
        %v1630 = vsub.s32 %v1627, %v1629
        %v1631 = vrot.slane %v1617, %v1630
        %v1632 = vcombine.low %v1599, %v1615
        %v1633 = vcombine.high %v1599, %v1615
        %v1635 = vunpack.c.l.s4 1934713408
        %v1636 = vunpack.c.0.s8 %v1635
        %v1637 = vlaneseq
        %v1638 = vshrl.u32 %v1637, 7
        %v1639 = vsub.s32 %v1636, %v1638
        %v1640 = vrot.slane %v1632, %v1639
        %v1642 = vunpack.c.l.s4 1934713408
        %v1643 = vunpack.c.0.s8 %v1642
        %v1644 = vlaneseq
        %v1645 = vshrl.u32 %v1644, 7
        %v1646 = vsub.s32 %v1643, %v1645
        %v1647 = vrot.slane %v1633, %v1646
        %v1648 = vcombine.high %v1624, 0.0
        %v1649 = vcombine.high %v1631, 0.0
        %v1650 = vcombine.high %v1640, 0.0
        %v1651 = vcombine.high %v1647, 0.0
        %v1652 = vcombine.low %v1624, %v1631
        %v1654 = vunpack.c.l.s4 1983009808
        %v1655 = vunpack.c.0.s8 %v1654
        %v1656 = vlaneseq
        %v1657 = vshrl.u32 %v1656, 7
        %v1658 = vsub.s32 %v1655, %v1657
        %v1659 = vrot.slane %v1652, %v1658
        %v1660 = vcombine.low %v1648, %v1649
        %v1662 = vunpack.c.l.s4 1983009808
        %v1663 = vunpack.c.0.s8 %v1662
        %v1664 = vlaneseq
        %v1665 = vshrl.u32 %v1664, 7
        %v1666 = vsub.s32 %v1663, %v1665
        %v1667 = vrot.slane %v1660, %v1666
        %v1668 = vcombine.low %v1640, %v1647
        %v1670 = vunpack.c.l.s4 1983009808
        %v1671 = vunpack.c.0.s8 %v1670
        %v1672 = vlaneseq
        %v1673 = vshrl.u32 %v1672, 7
        %v1674 = vsub.s32 %v1671, %v1673
        %v1675 = vrot.slane %v1668, %v1674
        %v1676 = vcombine.low %v1650, %v1651
        %v1678 = vunpack.c.l.s4 1983009808
        %v1679 = vunpack.c.0.s8 %v1678
        %v1680 = vlaneseq
        %v1681 = vshrl.u32 %v1680, 7
        %v1682 = vsub.s32 %v1679, %v1681
        %v1683 = vrot.slane %v1676, %v1682
        %v1684 = vcombine.low %v1659, %v1667
        %v1685 = vcombine.high %v1659, %v1667
        %v1687 = vunpack.c.l.s4 1934713408
        %v1688 = vunpack.c.0.s8 %v1687
        %v1689 = vlaneseq
        %v1690 = vshrl.u32 %v1689, 7
        %v1691 = vsub.s32 %v1688, %v1690
        %v1692 = vrot.slane %v1684, %v1691
        %v1694 = vunpack.c.l.s4 1934713408
        %v1695 = vunpack.c.0.s8 %v1694
        %v1696 = vlaneseq
        %v1697 = vshrl.u32 %v1696, 7
        %v1698 = vsub.s32 %v1695, %v1697
        %v1699 = vrot.slane %v1685, %v1698
        %v1700 = vcombine.low %v1675, %v1683
        %v1701 = vcombine.high %v1675, %v1683
        %v1703 = vunpack.c.l.s4 1934713408
        %v1704 = vunpack.c.0.s8 %v1703
        %v1705 = vlaneseq
        %v1706 = vshrl.u32 %v1705, 7
        %v1707 = vsub.s32 %v1704, %v1706
        %v1708 = vrot.slane %v1700, %v1707
        %v1710 = vunpack.c.l.s4 1934713408
        %v1711 = vunpack.c.0.s8 %v1710
        %v1712 = vlaneseq
        %v1713 = vshrl.u32 %v1712, 7
        %v1714 = vsub.s32 %v1711, %v1713
        %v1715 = vrot.slane %v1701, %v1714
        %v1716 = vcombine.low %v1692, %v1708
        %v1717 = vcombine.high %v1692, %v1708
        %v1718 = vcombine.low %v1699, %v1715
        %v1719 = vcombine.high %v1699, %v1715
        %1721 = vrot.lane.b32.xlu0 %v1717, 16
        %v1722 = vpop.permute.xlu0 %1721
        %1725 = vrot.lane.b32.xlu0 %v1718, 32
        %v1726 = vpop.permute.xlu0 %1725
        %1729 = vrot.lane.b32.xlu0 %v1719, 48
        %v1730 = vpop.permute.xlu0 %1729
        %v1732 = vsel %vm942, %v1716, %v1722
        %v1733 = vsel %vm393, %v1732, %v1726
        %vm1734 = vcmask 392192
        %v1735 = vsel %vm1734, %v1733, %v1730
        %v1736 = vld [vmem:[%s4] sm:$0xff]
        %v1737 = vld [vmem:[%s4 + $0x8] sm:$0xff]
        %v1738 = vld [vmem:[%s4 + $0x10] sm:$0xff]
        %v1739 = vld [vmem:[%s4 + $0x18] sm:$0xff]
        %v1740 = vld [vmem:[%s4 + $0x20] sm:$0xff]
        %v1741 = vld [vmem:[%s4 + $0x28] sm:$0xff]
        %v1742 = vld [vmem:[%s4 + $0x30] sm:$0xff]
        %v1743 = vld [vmem:[%s4 + $0x38] sm:$0xff]
        %v1745 = vsel %vm423, %v1735, 0
        %1747 = vmatprep.subr.mxu0 0.0
        %1748 = vmatpush1.msra.mxu0 0.0
        %1749 = vmatprep.subr.mxu0 0.0
        %1750 = vmatpush1.msra.mxu0 0.0
        %1751 = vmatprep.subr.mxu0 0.0
        %1752 = vmatpush1.msra.mxu0 0.0
        %1753 = vmatprep.subr.mxu0 0.0
        %1754 = vmatpush1.msra.mxu0 0.0
        %1755 = vmatprep.subr.mxu0 0.0
        %1756 = vmatpush1.msra.mxu0 0.0
        %1757 = vmatprep.subr.mxu0 0.0
        %1758 = vmatpush1.msra.mxu0 0.0
        %1759 = vmatprep.subr.mxu0 0.0
        %1760 = vmatpush1.msra.mxu0 0.0
        %1761 = vmatprep.subr.mxu0 0.0
        %1762 = vmatpush1.msra.mxu0 0.0
        %1763 = vmatprep.subr.mxu0 0.0
        %1764 = vmatpush1.msra.mxu0 %v1743
        %1765 = vmatprep.subr.mxu0 0.0
        %1766 = vmatpush1.msra.mxu0 %v1742
        %1767 = vmatprep.subr.mxu0 0.0
        %1768 = vmatpush1.msra.mxu0 %v1741
        %1769 = vmatprep.subr.mxu0 0.0
        %1770 = vmatpush1.msra.mxu0 %v1740
        %1771 = vmatprep.subr.mxu0 0.0
        %1772 = vmatpush1.msra.mxu0 %v1739
        %1773 = vmatprep.subr.mxu0 0.0
        %1774 = vmatpush1.msra.mxu0 %v1738
        %1775 = vmatprep.subr.mxu0 0.0
        %1776 = vmatpush1.msra.mxu0 %v1737
        %1777 = vmatprep.subr.mxu0 0.0
        %1778 = vmatpush1.msra.mxu0 %v1736
        %1779 = vmatprep.subr.mxu0 0.0
        %1780 = vmatpush2.msra.mxu0 0.0
        %1781 = vmatprep.subr.mxu0 0.0
        %1782 = vmatpush2.msra.mxu0 0.0
        %1783 = vmatprep.subr.mxu0 0.0
        %1784 = vmatpush2.msra.mxu0 0.0
        %1785 = vmatprep.subr.mxu0 0.0
        %1786 = vmatpush2.msra.mxu0 0.0
        %1787 = vmatprep.subr.mxu0 0.0
        %1788 = vmatpush2.msra.mxu0 0.0
        %1789 = vmatprep.subr.mxu0 0.0
        %1790 = vmatpush2.msra.mxu0 0.0
        %1791 = vmatprep.subr.mxu0 0.0
        %1792 = vmatpush2.msra.mxu0 0.0
        %1793 = vmatprep.subr.mxu0 0.0
        %1794 = vmatpush2.msra.mxu0 0.0
        %1795 = vmatprep.subr.mxu0 0.0
        %1796 = vmatpush2.msra.mxu0 0.0
        %1797 = vmatprep.subr.mxu0 0.0
        %1798 = vmatpush2.msra.mxu0 0.0
        %1799 = vmatprep.subr.mxu0 0.0
        %1800 = vmatpush2.msra.mxu0 0.0
        %1801 = vmatprep.subr.mxu0 0.0
        %1802 = vmatpush2.msra.mxu0 0.0
        %1803 = vmatprep.subr.mxu0 0.0
        %1804 = vmatpush2.msra.mxu0 0.0
        %1805 = vmatprep.subr.mxu0 0.0
        %1806 = vmatpush2.msra.mxu0 0.0
        %1807 = vmatprep.subr.mxu0 0.0
        %1808 = vmatpush2.msra.mxu0 0.0
        %1809 = vmatprep.subr.mxu0 0.0
        %1810 = vmatpush2.msra.mxu0 0.0
        %1811 = vmatprep.mubr.f32.mxu0 0.0
        %1812 = vmatmul.mubr.f32.gmra.mxu0 %v1745
        %v1813 = vpop.f32.mrf.mxu0
        %v1814 = vadd.f32 0.0, %v1813
        %v1815 = vpop.f32.mrf.mxu0
        %1816 = vdwg.mxu0
        %v1817 = vld [vmem:[%s7] sm:$0xf]
        %v1818 = vld [vmem:[%s8] sm:$0x7]
        %v1819 = vadd.f32 %v394, %v1814
        %v1820 = vlaneseq
        %v1821 = vshrl.u32 %v1820, 7
        %v1822 = vsub.s32 0, %v1821
        %v1823 = vrot.slane %v1817, %v1822
        %v1824 = vadd.f32 %v1819, %v1823
        %v1825 = vsel %vm423, %v1824, 0.0
        %1826 = vadd.xlane.f32.xlu0 %v1825
        %v1827 = vpop.xlane.xlu0 %1826
        %v1828 = vrcp.pop 64.0
        %v1829 = vmul.f32 %v1827, %v1828
        %v1830 = vsub.f32 %v1824, %v1829
        %v1831 = vmul.f32 %v1830, %v1830
        %v1832 = vsel %vm423, %v1831, 0.0
        %1833 = vadd.xlane.f32.xlu0 %v1832
        %v1834 = vpop.xlane.xlu0 %1833
        %v1835 = vmul.f32 %v1834, %v1828
        %v1836 = vadd.f32 %v1835, 1e-05
        %v1837 = vrsqrt.pop %v1836
        %v1838 = vmul.f32 %v1830, %v1837
        %v1839 = vlaneseq
        %v1840 = vshrl.u32 %v1839, 7
        %v1841 = vsub.s32 1, %v1840
        %v1842 = vrot.slane %v1817, %v1841
        %v1843 = vmul.f32 %v1838, %v1842
        %v1844 = vlaneseq
        %v1845 = vshrl.u32 %v1844, 7
        %v1846 = vsub.s32 2, %v1845
        %v1847 = vrot.slane %v1817, %v1846
        %v1848 = vadd.f32 %v1843, %v1847
        %v1849 = vld [vmem:[#allocation7] sm:$0xff]
        %v1850 = vld [vmem:[#allocation7 + $0x8] sm:$0xff]
        %v1851 = vld [vmem:[#allocation7 + $0x10] sm:$0xff]
        %v1852 = vld [vmem:[#allocation7 + $0x18] sm:$0xff]
        %v1853 = vld [vmem:[#allocation7 + $0x20] sm:$0xff]
        %v1854 = vld [vmem:[#allocation7 + $0x28] sm:$0xff]
        %v1855 = vld [vmem:[#allocation7 + $0x30] sm:$0xff]
        %v1856 = vld [vmem:[#allocation7 + $0x38] sm:$0xff]
        %v1857 = vlaneseq
        %v1858 = vshrl.u32 %v1857, 7
        %v1859 = vsub.s32 3, %v1858
        %v1860 = vrot.slane %v1817, %v1859
        %v1862 = vsel %vm423, %v1848, 0
        %1864 = vmatprep.subr.mxu0 0.0
        %1865 = vmatpush1.msra.mxu0 0.0
        %1866 = vmatprep.subr.mxu0 0.0
        %1867 = vmatpush1.msra.mxu0 0.0
        %1868 = vmatprep.subr.mxu0 0.0
        %1869 = vmatpush1.msra.mxu0 0.0
        %1870 = vmatprep.subr.mxu0 0.0
        %1871 = vmatpush1.msra.mxu0 0.0
        %1872 = vmatprep.subr.mxu0 0.0
        %1873 = vmatpush1.msra.mxu0 0.0
        %1874 = vmatprep.subr.mxu0 0.0
        %1875 = vmatpush1.msra.mxu0 0.0
        %1876 = vmatprep.subr.mxu0 0.0
        %1877 = vmatpush1.msra.mxu0 0.0
        %1878 = vmatprep.subr.mxu0 0.0
        %1879 = vmatpush1.msra.mxu0 0.0
        %1880 = vmatprep.subr.mxu0 0.0
        %1881 = vmatpush1.msra.mxu0 %v1856
        %1882 = vmatprep.subr.mxu0 0.0
        %1883 = vmatpush1.msra.mxu0 %v1855
        %1884 = vmatprep.subr.mxu0 0.0
        %1885 = vmatpush1.msra.mxu0 %v1854
        %1886 = vmatprep.subr.mxu0 0.0
        %1887 = vmatpush1.msra.mxu0 %v1853
        %1888 = vmatprep.subr.mxu0 0.0
        %1889 = vmatpush1.msra.mxu0 %v1852
        %1890 = vmatprep.subr.mxu0 0.0
        %1891 = vmatpush1.msra.mxu0 %v1851
        %1892 = vmatprep.subr.mxu0 0.0
        %1893 = vmatpush1.msra.mxu0 %v1850
        %1894 = vmatprep.subr.mxu0 0.0
        %1895 = vmatpush1.msra.mxu0 %v1849
        %1896 = vmatprep.subr.mxu0 0.0
        %1897 = vmatpush2.msra.mxu0 0.0
        %1898 = vmatprep.subr.mxu0 0.0
        %1899 = vmatpush2.msra.mxu0 0.0
        %1900 = vmatprep.subr.mxu0 0.0
        %1901 = vmatpush2.msra.mxu0 0.0
        %1902 = vmatprep.subr.mxu0 0.0
        %1903 = vmatpush2.msra.mxu0 0.0
        %1904 = vmatprep.subr.mxu0 0.0
        %1905 = vmatpush2.msra.mxu0 0.0
        %1906 = vmatprep.subr.mxu0 0.0
        %1907 = vmatpush2.msra.mxu0 0.0
        %1908 = vmatprep.subr.mxu0 0.0
        %1909 = vmatpush2.msra.mxu0 0.0
        %1910 = vmatprep.subr.mxu0 0.0
        %1911 = vmatpush2.msra.mxu0 0.0
        %1912 = vmatprep.subr.mxu0 0.0
        %1913 = vmatpush2.msra.mxu0 0.0
        %1914 = vmatprep.subr.mxu0 0.0
        %1915 = vmatpush2.msra.mxu0 0.0
        %1916 = vmatprep.subr.mxu0 0.0
        %1917 = vmatpush2.msra.mxu0 0.0
        %1918 = vmatprep.subr.mxu0 0.0
        %1919 = vmatpush2.msra.mxu0 0.0
        %1920 = vmatprep.subr.mxu0 0.0
        %1921 = vmatpush2.msra.mxu0 0.0
        %1922 = vmatprep.subr.mxu0 0.0
        %1923 = vmatpush2.msra.mxu0 0.0
        %1924 = vmatprep.subr.mxu0 0.0
        %1925 = vmatpush2.msra.mxu0 0.0
        %1926 = vmatprep.subr.mxu0 0.0
        %1927 = vmatpush2.msra.mxu0 0.0
        %1928 = vmatprep.mubr.f32.mxu0 0.0
        %1929 = vmatmul.mubr.f32.gmra.mxu0 %v1862
        %v1930 = vpop.f32.mrf.mxu0
        %v1931 = vadd.f32 %v1860, %v1930
        %v1932 = vpop.f32.mrf.mxu0
        %1933 = vdwg.mxu0
        %v1934 = vmax.f32 %v1931, 0.0
        %v1935 = vld [vmem:[%s6] sm:$0xff]
        %v1936 = vld [vmem:[%s6 + $0x8] sm:$0xff]
        %v1937 = vld [vmem:[%s6 + $0x10] sm:$0xff]
        %v1938 = vld [vmem:[%s6 + $0x18] sm:$0xff]
        %v1939 = vld [vmem:[%s6 + $0x20] sm:$0xff]
        %v1940 = vld [vmem:[%s6 + $0x28] sm:$0xff]
        %v1941 = vld [vmem:[%s6 + $0x30] sm:$0xff]
        %v1942 = vld [vmem:[%s6 + $0x38] sm:$0xff]
        %v1943 = vlaneseq
        %v1944 = vshrl.u32 %v1943, 7
        %v1945 = vsub.s32 0, %v1944
        %v1946 = vrot.slane %v1818, %v1945
        %v1948 = vsel %vm423, %v1934, 0
        %1950 = vmatprep.subr.mxu0 0.0
        %1951 = vmatpush1.msra.mxu0 0.0
        %1952 = vmatprep.subr.mxu0 0.0
        %1953 = vmatpush1.msra.mxu0 0.0
        %1954 = vmatprep.subr.mxu0 0.0
        %1955 = vmatpush1.msra.mxu0 0.0
        %1956 = vmatprep.subr.mxu0 0.0
        %1957 = vmatpush1.msra.mxu0 0.0
        %1958 = vmatprep.subr.mxu0 0.0
        %1959 = vmatpush1.msra.mxu0 0.0
        %1960 = vmatprep.subr.mxu0 0.0
        %1961 = vmatpush1.msra.mxu0 0.0
        %1962 = vmatprep.subr.mxu0 0.0
        %1963 = vmatpush1.msra.mxu0 0.0
        %1964 = vmatprep.subr.mxu0 0.0
        %1965 = vmatpush1.msra.mxu0 0.0
        %1966 = vmatprep.subr.mxu0 0.0
        %1967 = vmatpush1.msra.mxu0 %v1942
        %1968 = vmatprep.subr.mxu0 0.0
        %1969 = vmatpush1.msra.mxu0 %v1941
        %1970 = vmatprep.subr.mxu0 0.0
        %1971 = vmatpush1.msra.mxu0 %v1940
        %1972 = vmatprep.subr.mxu0 0.0
        %1973 = vmatpush1.msra.mxu0 %v1939
        %1974 = vmatprep.subr.mxu0 0.0
        %1975 = vmatpush1.msra.mxu0 %v1938
        %1976 = vmatprep.subr.mxu0 0.0
        %1977 = vmatpush1.msra.mxu0 %v1937
        %1978 = vmatprep.subr.mxu0 0.0
        %1979 = vmatpush1.msra.mxu0 %v1936
        %1980 = vmatprep.subr.mxu0 0.0
        %1981 = vmatpush1.msra.mxu0 %v1935
        %1982 = vmatprep.subr.mxu0 0.0
        %1983 = vmatpush2.msra.mxu0 0.0
        %1984 = vmatprep.subr.mxu0 0.0
        %1985 = vmatpush2.msra.mxu0 0.0
        %1986 = vmatprep.subr.mxu0 0.0
        %1987 = vmatpush2.msra.mxu0 0.0
        %1988 = vmatprep.subr.mxu0 0.0
        %1989 = vmatpush2.msra.mxu0 0.0
        %1990 = vmatprep.subr.mxu0 0.0
        %1991 = vmatpush2.msra.mxu0 0.0
        %1992 = vmatprep.subr.mxu0 0.0
        %1993 = vmatpush2.msra.mxu0 0.0
        %1994 = vmatprep.subr.mxu0 0.0
        %1995 = vmatpush2.msra.mxu0 0.0
        %1996 = vmatprep.subr.mxu0 0.0
        %1997 = vmatpush2.msra.mxu0 0.0
        %1998 = vmatprep.subr.mxu0 0.0
        %1999 = vmatpush2.msra.mxu0 0.0
        %2000 = vmatprep.subr.mxu0 0.0
        %2001 = vmatpush2.msra.mxu0 0.0
        %2002 = vmatprep.subr.mxu0 0.0
        %2003 = vmatpush2.msra.mxu0 0.0
        %2004 = vmatprep.subr.mxu0 0.0
        %2005 = vmatpush2.msra.mxu0 0.0
        %2006 = vmatprep.subr.mxu0 0.0
        %2007 = vmatpush2.msra.mxu0 0.0
        %2008 = vmatprep.subr.mxu0 0.0
        %2009 = vmatpush2.msra.mxu0 0.0
        %2010 = vmatprep.subr.mxu0 0.0
        %2011 = vmatpush2.msra.mxu0 0.0
        %2012 = vmatprep.subr.mxu0 0.0
        %2013 = vmatpush2.msra.mxu0 0.0
        %2014 = vmatprep.mubr.f32.mxu0 0.0
        %2015 = vmatmul.mubr.f32.gmra.mxu0 %v1948
        %v2016 = vpop.f32.mrf.mxu0
        %v2017 = vadd.f32 %v1946, %v2016
        %v2018 = vpop.f32.mrf.mxu0
        %2019 = vdwg.mxu0
        %v2020 = vadd.f32 %v387, %v2017
        %v2021 = vsel %vm393, %v2020, 0.0
        %2022 = vadd.xlane.f32.xlu0 %v2021
        %v2023 = vpop.xlane.xlu0 %2022
        %v2024 = vrcp.pop 32.0
        %v2025 = vmul.f32 %v2023, %v2024
        %v2026 = vsub.f32 %v2020, %v2025
        %v2027 = vmul.f32 %v2026, %v2026
        %v2028 = vsel %vm393, %v2027, 0.0
        %2029 = vadd.xlane.f32.xlu0 %v2028
        %v2030 = vpop.xlane.xlu0 %2029
        %v2031 = vmul.f32 %v2030, %v2024
        %v2032 = vadd.f32 %v2031, 1e-05
        %v2033 = vrsqrt.pop %v2032
        %v2034 = vmul.f32 %v2026, %v2033
        %v2035 = vlaneseq
        %v2036 = vshrl.u32 %v2035, 7
        %v2037 = vsub.s32 1, %v2036
        %v2038 = vrot.slane %v1818, %v2037
        %v2039 = vmul.f32 %v2034, %v2038
        %v2040 = vlaneseq
        %v2041 = vshrl.u32 %v2040, 7
        %v2042 = vsub.s32 2, %v2041
        %v2043 = vrot.slane %v1818, %v2042
        %v2044 = vadd.f32 %v2039, %v2043
        %2045 = vst.msk [vmem:[%s378] sm:$0xff] %vm393, %v2044
        %s2046 = sand.u32 %s232, 1
        %s2047 = scalar_lea.sflag [#allocation4], %s2046
        %s2048 = sand.u32 %s232, 1
        %s2049 = smul.addr %s2048, 8
        %s2050 = scalar_lea.vmem [#allocation8], %s2049
        // Predicated region
        $region69: #{tpu_custom_call.1} parent=55 // pred_check
          %p2051 = pneg %p242
        $region70: #{tpu_custom_call.1} parent=55 // pred_check_branch
          %2053 = sbr.rel (%p2051) target = $region72
        $region71: #{tpu_custom_call.1} parent=55 // pred_region
          %s2055 = ssub.s32 128, 128
          %2056 = vsyncadd %s2047, %s2055
          %s2057 = smul.addr %s25, 128
          %s2058 = scalar_lea.hbm %s9, %s2057
          %s2060 = sshll.u32 %s2050, 4
          %s2061 = int_to_ptr.vmem [resolvable:$true] %s2060
          %2063 = dma.vmem_to_hbm [thread:$0]  %s2061, 128, %s2058, %s2047
        $region72: #{tpu_custom_call.1} parent=55 // pred_fallthru
          _
      $region56: #{tpu_custom_call.1} parent=5 // pred_fallthru
        _
      %p2064 = scmp.le.s32.totalorder 2, %s20
      // Predicated region
      $region73: #{tpu_custom_call.1} parent=5 // pred_check
        %p2065 = pneg %p2064
      $region74: #{tpu_custom_call.1} parent=5 // pred_check_branch
        %2067 = sbr.rel (%p2065) target = $region76
      $region75: #{tpu_custom_call.1} parent=5 // pred_region
        %s2068 = ssub.s32 %s20, 2
        // Predicated region
        $region77: #{tpu_custom_call.1} parent=75 // pred_check
          %p2069 = pneg %p248
        $region78: #{tpu_custom_call.1} parent=75 // pred_check_branch
          %2071 = sbr.rel (%p2069) target = $region80
        $region79: #{tpu_custom_call.1} parent=75 // pred_region
          %s2072 = sand.u32 %s233, 1
          %s2073 = scalar_lea.sflag [#allocation4], %s2072
          %s2074 = sand.u32 %s233, 1
          %s2075 = smul.addr %s2074, 8
          %s2076 = scalar_lea.vmem [#allocation8], %s2075
          %2077 = dma.done %s2073, 128
        $region80: #{tpu_custom_call.1} parent=75 // pred_fallthru
          _
      $region76: #{tpu_custom_call.1} parent=5 // pred_fallthru
        _
    $region6: #{tpu_custom_call.1} parent=1 // loop_footer
      %s24 = sadd.s32 1, %s20
    $region7: #{tpu_custom_call.1} parent=1 // loop_footer_branch
      %19 = sbr.rel target = $region3
    $region8: #{tpu_custom_call.1} parent=1 // loop_exit
      _
    %2078 = vsyncpa [#allocation3], 1
    %s2079 = scalar_lea.sflag [#allocation3], 1
    %2080 = vsyncpa %s2079, 1
    %2081 = vsyncpa [#allocation6], 1
    %2082 = vsyncpa [#allocation4], 1
    %s2083 = scalar_lea.sflag [#allocation4], 1
    %2084 = vsyncpa %s2083, 1

</llo_original>
